<compile_context>
chip_gen: v5e
topology: v5e:2x2
jax: 0.10.0
libtpu: 0.0.40
codegen_flags: <defaults>
</compile_context>

<pallas_src>
import jax
import jax.numpy as jnp
from jax.experimental import pallas as pl
from jax.experimental.pallas import tpu as pltpu


def _round_up(x, m):
    return ((x + m - 1) // m) * m


# ----------------------------- Pallas kernel --------------------------------
def _gru_chunk_kernel(len_ref, x_ref, wi_ref, wh_ref, bi_ref, bhn_ref,
                      out_ref, hn_ref,
                      g_scr, h_scr):
    """One grid step == TT time steps of the GRU recurrence for one batch block.

    Refs (per grid step (b, t)):
      len_ref : (BB, 1)  int32    sequence lengths of this batch block
      x_ref   : (TT, BB, E) f32   embedded input chunk (time-major)
      wi_ref  : (E, 3Hp) bf16     [W_ir|W_iz|W_in]  (columns per gate padded to Hp)
      wh_ref  : (Hp, 3Hp) bf16    [W_hr|W_hz|W_hn]
      bi_ref  : (1, 3Hp) f32      [b_ir+b_hr | b_iz+b_hz | b_in]
      bhn_ref : (1, Hp)  f32      b_hn (kept separate: it is gated by r)
      out_ref : (TT, BB, Hp) f32  per-step output (zeroed past each sequence length)
      hn_ref  : (BB, Hp) f32      final hidden state of the batch block
      g_scr   : (TT*BB, 3Hp) f32  chunk-wide input-gate pre-activations
      h_scr   : (BB, Hp) f32      recurrent state, persists across time chunks
    """
    TT, BB, E = x_ref.shape
    Hp = hn_ref.shape[-1]
    t_chunk = pl.program_id(1)

    @pl.when(t_chunk == 0)
    def _():
        h_scr[...] = jnp.zeros_like(h_scr)

    # ---- input-side projection for the whole chunk: one big MXU matmul (M = TT*BB) ----
    # (TT, BB, E) -> (TT*BB, E) is layout-preserving because BB is a multiple of 8.
    x_flat = x_ref[...].reshape(TT * BB, E).astype(jnp.bfloat16)
    g_scr[...] = (jnp.dot(x_flat, wi_ref[...], preferred_element_type=jnp.float32)
                  + bi_ref[...])

    bhn = bhn_ref[...]                      # (1, Hp)  hoisted out of the step loop
    lens = len_ref[...]                     # (BB, 1)  int32
    t0 = t_chunk * TT

    h = h_scr[...]                          # (BB, Hp) f32, carried in registers
    for i in range(TT):                     # static unroll over the chunk
        g = g_scr[i * BB:(i + 1) * BB, :]   # (BB, 3Hp) contiguous, sublane-aligned
        hg = jnp.dot(h.astype(jnp.bfloat16), wh_ref[...],
                     preferred_element_type=jnp.float32)        # (BB, 3Hp)
        r = jax.nn.sigmoid(g[:, :Hp] + hg[:, :Hp])
        z = jax.nn.sigmoid(g[:, Hp:2 * Hp] + hg[:, Hp:2 * Hp])
        n = jnp.tanh(g[:, 2 * Hp:] + r * (hg[:, 2 * Hp:] + bhn))
        h_new = (1.0 - z) * n + z * h

        valid = (t0 + i) < lens             # (BB, 1): is this step inside sequence b?
        h = jnp.where(valid, h_new, h)      # freeze hidden state once the sequence ends
        out_ref[i] = jnp.where(valid, h_new, 0.0).astype(out_ref.dtype)

    h_scr[...] = h
    hn_ref[...] = h.astype(hn_ref.dtype)    # written every chunk (cheap, robust)


def gru_forward_pallas(x_tbe, lengths, packed, hidden_size, *, tt=8):
    """x_tbe: (T, B, E) f32 time-major embedded input; lengths: (B,) sorted descending."""
    T, B, E = x_tbe.shape
    wi, wh, bi, bhn = packed["wi"], packed["wh"], packed["bi"], packed["bhn"]
    Hp = wh.shape[0]

    # --- padding / tiling ---
    Bp = _round_up(B, 8)
    if Bp <= 128:
        b_block = Bp
    else:
        b_block = 128
        Bp = _round_up(B, 128)
    Tp = _round_up(T, tt)
    nb, nt = Bp // b_block, Tp // tt

    x_pad = jnp.pad(x_tbe, ((0, Tp - T), (0, Bp - B), (0, 0)))
    len_pad = jnp.pad(lengths.astype(jnp.int32).reshape(B, 1), ((0, Bp - B), (0, 0)))

    out_pad, hn_pad = pl.pallas_call(
        _gru_chunk_kernel,
        out_shape=(jax.ShapeDtypeStruct((Tp, Bp, Hp), jnp.float32),
                   jax.ShapeDtypeStruct((Bp, Hp), jnp.float32)),
        grid=(nb, nt),
        in_specs=[
            pl.BlockSpec((b_block, 1), lambda b, t: (b, 0)),            # lengths
            pl.BlockSpec((tt, b_block, E), lambda b, t: (t, b, 0)),     # x chunk
            pl.BlockSpec((E, 3 * Hp), lambda b, t: (0, 0)),             # W_i (fused gates)
            pl.BlockSpec((Hp, 3 * Hp), lambda b, t: (0, 0)),            # W_h (fused gates)
            pl.BlockSpec((1, 3 * Hp), lambda b, t: (0, 0)),             # b_i (folded)
            pl.BlockSpec((1, Hp), lambda b, t: (0, 0)),                 # b_hn
        ],
        out_specs=(pl.BlockSpec((tt, b_block, Hp), lambda b, t: (t, b, 0)),
                   pl.BlockSpec((b_block, Hp), lambda b, t: (b, 0))),
        scratch_shapes=[pltpu.VMEM((tt * b_block, 3 * Hp), jnp.float32),
                        pltpu.VMEM((b_block, Hp), jnp.float32)],
        compiler_params=pltpu.CompilerParams(
            dimension_semantics=("parallel", "arbitrary")),   # batch parallel, time serial
    )(len_pad, x_pad, wi, wh, bi, bhn)

    H = hidden_size
    output = jnp.transpose(out_pad[:T, :B, :H], (1, 0, 2))    # (B, T, H) batch_first
    return output, hn_pad[:B, :H]


# ------------------------------- Module --------------------------------------
class Encode:
    """JAX/Pallas port of the PyTorch `encode` module (GRU branch, 1 layer)."""

    def __init__(self, rnn_type, vocab_size, input_size, hidden_size,
                 num_layers=1, dropout=0, key=jax.random.PRNGKey(0)):
        assert rnn_type != "lstm", "only the GRU branch is implemented"
        assert num_layers == 1, "only num_layers=1 is implemented"
        self.hidden_size = hidden_size
        E, H = input_size, hidden_size
        Hp = _round_up(H, 128)

        k = 1.0 / jnp.sqrt(hidden_size)
        keys = jax.random.split(key, 13)
        u = lambda kk, shape: jax.random.uniform(kk, shape, jnp.float32, -k, k)

        # Parameter shapes match nn.Embedding / nn.GRU (PyTorch gate order r, z, n).
        self.embedding = jax.random.normal(keys[0], (vocab_size, E), jnp.float32)
        raw = {
            "w_ir": u(keys[1], (E, H)), "w_iz": u(keys[2], (E, H)), "w_in": u(keys[3], (E, H)),
            "w_hr": u(keys[4], (H, H)), "w_hz": u(keys[5], (H, H)), "w_hn": u(keys[6], (H, H)),
            # PyTorch has separate b_ih / b_hh; for r and z they only ever appear summed,
            # so fold them.  b_in / b_hn must stay separate (b_hn is gated by r).
            "b_r": u(keys[7], (1, H)) + u(keys[8], (1, H)),
            "b_z": u(keys[9], (1, H)) + u(keys[10], (1, H)),
            "b_in": u(keys[11], (1, H)),
            "b_hn": u(keys[12], (1, H)),
        }
        self.params = raw

        # --- pack + pad weights for the kernel: gates concatenated, H padded to Hp ---
        padc = lambda a: jnp.pad(a, ((0, 0), (0, Hp - H)))
        wi = jnp.concatenate([padc(raw["w_ir"]), padc(raw["w_iz"]), padc(raw["w_in"])], axis=1)
        wh = jnp.concatenate(
            [jnp.pad(w, ((0, Hp - H), (0, Hp - H))) for w in
             (raw["w_hr"], raw["w_hz"], raw["w_hn"])], axis=1)
        bi = jnp.concatenate([padc(raw["b_r"]), padc(raw["b_z"]), padc(raw["b_in"])], axis=1)
        self.packed = {
            "wi": wi.astype(jnp.bfloat16),   # (E, 3Hp) bf16 — MXU-native, half the VMEM
            "wh": wh.astype(jnp.bfloat16),   # (Hp, 3Hp) bf16
            "bi": bi,                        # (1, 3Hp) f32
            "bhn": padc(raw["b_hn"]),        # (1, Hp)  f32
        }

    def __call__(self, encode_val, input_length):
        # encode_val: (B, T) int32 token ids; input_length: (B,) sorted desc,
        # input_length[0] == T (pack_padded_sequence, enforce_sorted=True).
        # Gather directly into time-major layout — no (B,T,E) activation transpose.
        emb_tbe = self.embedding[encode_val.T]                 # (T, B, E)
        output, h_n = gru_forward_pallas(emb_tbe, input_length, self.packed,
                                         self.hidden_size)
        hidden = h_n[None, :, :]                               # (num_layers=1, B, H)
        return output, hidden


# ------------------------- pure-JAX reference (check) -------------------------
def _ref_gru(x_tbe, lengths, packed, H):
    """Mirrors the kernel math (same bf16-weight / f32-accumulate precision)."""
    wi, wh, bi, bhn = packed["wi"], packed["wh"], packed["bi"], packed["bhn"]
    Hp = wh.shape[0]
    T, B, _ = x_tbe.shape
    h = jnp.zeros((B, Hp), jnp.float32)
    outs = []
    for t in range(T):
        g = jnp.dot(x_tbe[t].astype(jnp.bfloat16), wi,
                    preferred_element_type=jnp.float32) + bi
        hg = jnp.dot(h.astype(jnp.bfloat16), wh, preferred_element_type=jnp.float32)
        r = jax.nn.sigmoid(g[:, :Hp] + hg[:, :Hp])
        z = jax.nn.sigmoid(g[:, Hp:2 * Hp] + hg[:, Hp:2 * Hp])
        n = jnp.tanh(g[:, 2 * Hp:] + r * (hg[:, 2 * Hp:] + bhn))
        h_new = (1.0 - z) * n + z * h
        valid = (t < lengths)[:, None]
        h = jnp.where(valid, h_new, h)
        outs.append(jnp.where(valid, h_new, 0.0))
    out = jnp.stack(outs, axis=1)            # (B, T, Hp)
    return out[:, :, :H], h[:, :H]


if __name__ == "__main__":
    B, T, VOCAB, E, H = 2, 8, 16, 32, 32

    key = jax.random.PRNGKey(0)
    k_tok, k_model = jax.random.split(key)
    tokens = jax.random.randint(k_tok, (B, T), 0, VOCAB, dtype=jnp.int32)
    lengths = jnp.array([8, 5], dtype=jnp.int32)   # sorted descending, max == T

    model = Encode("gru", VOCAB, E, H, num_layers=1, dropout=0, key=k_model)

    output, hidden = model(tokens, lengths)
    output = jax.block_until_ready(output)
    hidden = jax.block_until_ready(hidden)

    assert output.shape == (B, T, H) and hidden.shape == (1, B, H)

    # Verify against a pure-JAX reference of the same packed-GRU computation.
    x_tbe = model.embedding[tokens.T]
    ref_out, ref_h = _ref_gru(x_tbe, lengths, model.packed, H)
    assert jnp.allclose(output, ref_out, atol=1e-3, rtol=1e-3), "output mismatch"
    assert jnp.allclose(hidden[0], ref_h, atol=1e-3, rtol=1e-3), "hidden mismatch"

    print("KERNEL_OK")
</pallas_src>

<mosaic_0001>
module attributes {stable_mosaic.version = 11 : i64} {
  func.func @_gru_chunk_kernel(%arg0: i32, %arg1: i32, %arg2: memref<8x1xi32, #tpu.memory_space<vmem>>, %arg3: memref<8x8x32xf32, #tpu.memory_space<vmem>>, %arg4: memref<32x384xbf16, #tpu.memory_space<vmem>>, %arg5: memref<128x384xbf16, #tpu.memory_space<vmem>>, %arg6: memref<1x384xf32, #tpu.memory_space<vmem>>, %arg7: memref<1x128xf32, #tpu.memory_space<vmem>>, %arg8: memref<8x8x128xf32, #tpu.memory_space<vmem>>, %arg9: memref<8x128xf32, #tpu.memory_space<vmem>>, %arg10: memref<64x384xf32, #tpu.memory_space<vmem>>, %arg11: memref<8x128xf32, #tpu.memory_space<vmem>>) attributes {dimension_semantics = [#tpu.dimension_semantics<parallel>, #tpu.dimension_semantics<arbitrary>], iteration_bounds = array<i64: 1, 1>, scalar_prefetch = 0 : i64, scratch_operands = 2 : i64, tpu.core_type = #tpu.core_type<tc>, window_params = [{transform_indices = @transform_0, window_bounds = array<i64: 8, 1>}, {transform_indices = @transform_1, window_bounds = array<i64: 8, 8, 32>}, {pipeline_mode = #tpu.pipeline_mode<synchronous>, transform_indices = @transform_2, window_bounds = array<i64: 32, 384>}, {pipeline_mode = #tpu.pipeline_mode<synchronous>, transform_indices = @transform_3, window_bounds = array<i64: 128, 384>}, {pipeline_mode = #tpu.pipeline_mode<synchronous>, transform_indices = @transform_4, window_bounds = array<i64: 1, 384>}, {pipeline_mode = #tpu.pipeline_mode<synchronous>, transform_indices = @transform_5, window_bounds = array<i64: 1, 128>}, {transform_indices = @transform_6, window_bounds = array<i64: 8, 8, 128>}, {transform_indices = @transform_7, window_bounds = array<i64: 8, 128>}]} {
    %c0_i32 = arith.constant 0 : i32
    %0 = arith.cmpi eq, %arg1, %c0_i32 : i32
    %1 = arith.extui %0 : i1 to i32
    %c0_i32_0 = arith.constant 0 : i32
    %2 = arith.cmpi ne, %1, %c0_i32_0 : i32
    scf.if %2 {
      %cst_102 = arith.constant 0.000000e+00 : f32
      %378 = vector.broadcast %cst_102 : f32 to vector<8x128xf32>
      %c0_103 = arith.constant 0 : index
      %c0_104 = arith.constant 0 : index
      %379 = vector.load %arg11[%c0_103, %c0_104] : memref<8x128xf32, #tpu.memory_space<vmem>>, vector<8x128xf32>
      tpu.vector_store %arg11[%c0_103, %c0_104], %378 {strides = array<i32>} : memref<8x128xf32, #tpu.memory_space<vmem>>, vector<8x128xf32>,
    } else {
    }
    %c0 = arith.constant 0 : index
    %c0_1 = arith.constant 0 : index
    %c0_2 = arith.constant 0 : index
    %3 = vector.load %arg3[%c0, %c0_1, %c0_2] : memref<8x8x32xf32, #tpu.memory_space<vmem>>, vector<8x8x32xf32>
    %4 = vector.shape_cast %3 : vector<8x8x32xf32> to vector<64x32xf32>
    %5 = arith.truncf %4 : vector<64x32xf32> to vector<64x32xbf16>
    %c0_3 = arith.constant 0 : index
    %c0_4 = arith.constant 0 : index
    %6 = vector.load %arg4[%c0_3, %c0_4] : memref<32x384xbf16, #tpu.memory_space<vmem>>, vector<32x384xbf16>
    %cst = arith.constant dense<0.000000e+00> : vector<64x384xf32>
    %7 = tpu.matmul %5, %6, %cst {dimension_numbers = #tpu.dot_dimension_numbers<[1], [0], [0], [1], [0, 0, 1, 1], [], []>} : vector<64x32xbf16>, vector<32x384xbf16>, vector<64x384xf32> -> vector<64x384xf32>
    %c0_5 = arith.constant 0 : index
    %c0_6 = arith.constant 0 : index
    %8 = vector.load %arg6[%c0_5, %c0_6] : memref<1x384xf32, #tpu.memory_space<vmem>>, vector<1x384xf32>
    %9 = vector.broadcast %8 : vector<1x384xf32> to vector<64x384xf32>
    %10 = arith.addf %7, %9 : vector<64x384xf32>
    %c0_7 = arith.constant 0 : index
    %c0_8 = arith.constant 0 : index
    %11 = vector.load %arg10[%c0_7, %c0_8] : memref<64x384xf32, #tpu.memory_space<vmem>>, vector<64x384xf32>
    tpu.vector_store %arg10[%c0_7, %c0_8], %10 {strides = array<i32>} : memref<64x384xf32, #tpu.memory_space<vmem>>, vector<64x384xf32>,
    %c0_9 = arith.constant 0 : index
    %c0_10 = arith.constant 0 : index
    %12 = vector.load %arg7[%c0_9, %c0_10] : memref<1x128xf32, #tpu.memory_space<vmem>>, vector<1x128xf32>
    %c0_11 = arith.constant 0 : index
    %c0_12 = arith.constant 0 : index
    %13 = vector.load %arg2[%c0_11, %c0_12] : memref<8x1xi32, #tpu.memory_space<vmem>>, vector<8x1xi32>
    %c8_i32 = arith.constant 8 : i32
    %14 = arith.muli %arg1, %c8_i32 : i32
    %c0_13 = arith.constant 0 : index
    %c0_14 = arith.constant 0 : index
    %15 = vector.load %arg11[%c0_13, %c0_14] : memref<8x128xf32, #tpu.memory_space<vmem>>, vector<8x128xf32>
    %c0_15 = arith.constant 0 : index
    %c0_16 = arith.constant 0 : index
    %16 = vector.load %arg10[%c0_15, %c0_16] : memref<64x384xf32, #tpu.memory_space<vmem>>, vector<8x384xf32>
    %17 = arith.truncf %15 : vector<8x128xf32> to vector<8x128xbf16>
    %c0_17 = arith.constant 0 : index
    %c0_18 = arith.constant 0 : index
    %18 = vector.load %arg5[%c0_17, %c0_18] : memref<128x384xbf16, #tpu.memory_space<vmem>>, vector<128x384xbf16>
    %cst_19 = arith.constant dense<0.000000e+00> : vector<8x384xf32>
    %19 = tpu.matmul %17, %18, %cst_19 {dimension_numbers = #tpu.dot_dimension_numbers<[1], [0], [0], [1], [0, 0, 1, 1], [], []>} : vector<8x128xbf16>, vector<128x384xbf16>, vector<8x384xf32> -> vector<8x384xf32>
    %20 = vector.extract_strided_slice %16 {offsets = [0, 0], sizes = [8, 128], strides = [1, 1]} : vector<8x384xf32> to vector<8x128xf32>
    %21 = vector.extract_strided_slice %19 {offsets = [0, 0], sizes = [8, 128], strides = [1, 1]} : vector<8x384xf32> to vector<8x128xf32>
    %22 = arith.addf %20, %21 : vector<8x128xf32>
    %23 = arith.negf %22 : vector<8x128xf32>
    %24 = math.exp %23 : vector<8x128xf32>
    %cst_20 = arith.constant 1.000000e+00 : f32
    %25 = vector.broadcast %cst_20 : f32 to vector<8x128xf32>
    %26 = arith.addf %25, %24 : vector<8x128xf32>
    %27 = arith.divf %25, %26 : vector<8x128xf32>
    %28 = vector.extract_strided_slice %16 {offsets = [0, 128], sizes = [8, 128], strides = [1, 1]} : vector<8x384xf32> to vector<8x128xf32>
    %29 = vector.extract_strided_slice %19 {offsets = [0, 128], sizes = [8, 128], strides = [1, 1]} : vector<8x384xf32> to vector<8x128xf32>
    %30 = arith.addf %28, %29 : vector<8x128xf32>
    %31 = arith.negf %30 : vector<8x128xf32>
    %32 = math.exp %31 : vector<8x128xf32>
    %cst_21 = arith.constant 1.000000e+00 : f32
    %33 = vector.broadcast %cst_21 : f32 to vector<8x128xf32>
    %34 = arith.addf %33, %32 : vector<8x128xf32>
    %35 = arith.divf %33, %34 : vector<8x128xf32>
    %36 = vector.extract_strided_slice %16 {offsets = [0, 256], sizes = [8, 128], strides = [1, 1]} : vector<8x384xf32> to vector<8x128xf32>
    %37 = vector.extract_strided_slice %19 {offsets = [0, 256], sizes = [8, 128], strides = [1, 1]} : vector<8x384xf32> to vector<8x128xf32>
    %38 = vector.broadcast %12 : vector<1x128xf32> to vector<8x128xf32>
    %39 = arith.addf %37, %38 : vector<8x128xf32>
    %40 = arith.mulf %27, %39 : vector<8x128xf32>
    %41 = arith.addf %36, %40 : vector<8x128xf32>
    %42 = math.tanh %41 : vector<8x128xf32>
    %cst_22 = arith.constant 1.000000e+00 : f32
    %43 = vector.broadcast %cst_22 : f32 to vector<8x128xf32>
    %44 = arith.subf %43, %35 : vector<8x128xf32>
    %45 = arith.mulf %44, %42 : vector<8x128xf32>
    %46 = arith.mulf %35, %15 : vector<8x128xf32>
    %47 = arith.addf %45, %46 : vector<8x128xf32>
    %c0_i32_23 = arith.constant 0 : i32
    %48 = arith.addi %14, %c0_i32_23 : i32
    %49 = vector.broadcast %48 : i32 to vector<8x1xi32>
    %50 = arith.cmpi slt, %49, %13 : vector<8x1xi32>
    %51 = vector.shape_cast %50 : vector<8x1xi1> to vector<8x1xi1>
    %52 = vector.broadcast %51 : vector<8x1xi1> to vector<8x128xi1>
    %53 = arith.select %52, %47, %15 : vector<8x128xi1>, vector<8x128xf32>
    %cst_24 = arith.constant 0.000000e+00 : f32
    %54 = vector.shape_cast %50 : vector<8x1xi1> to vector<8x1xi1>
    %55 = vector.broadcast %54 : vector<8x1xi1> to vector<8x128xi1>
    %56 = vector.broadcast %cst_24 : f32 to vector<8x128xf32>
    %57 = arith.select %55, %47, %56 : vector<8x128xi1>, vector<8x128xf32>
    %c0_25 = arith.constant 0 : index
    %c0_26 = arith.constant 0 : index
    %c0_27 = arith.constant 0 : index
    %58 = vector.load %arg8[%c0_25, %c0_26, %c0_27] : memref<8x8x128xf32, #tpu.memory_space<vmem>>, vector<1x8x128xf32>
    %59 = vector.shape_cast %58 : vector<1x8x128xf32> to vector<8x128xf32>
    %60 = vector.shape_cast %57 : vector<8x128xf32> to vector<1x8x128xf32>
    tpu.vector_store %arg8[%c0_25, %c0_26, %c0_27], %60 {strides = array<i32>} : memref<8x8x128xf32, #tpu.memory_space<vmem>>, vector<1x8x128xf32>,
    %c8 = arith.constant 8 : index
    %c0_28 = arith.constant 0 : index
    %61 = vector.load %arg10[%c8, %c0_28] : memref<64x384xf32, #tpu.memory_space<vmem>>, vector<8x384xf32>
    %62 = arith.truncf %53 : vector<8x128xf32> to vector<8x128xbf16>
    %c0_29 = arith.constant 0 : index
    %c0_30 = arith.constant 0 : index
    %63 = vector.load %arg5[%c0_29, %c0_30] : memref<128x384xbf16, #tpu.memory_space<vmem>>, vector<128x384xbf16>
    %cst_31 = arith.constant dense<0.000000e+00> : vector<8x384xf32>
    %64 = tpu.matmul %62, %63, %cst_31 {dimension_numbers = #tpu.dot_dimension_numbers<[1], [0], [0], [1], [0, 0, 1, 1], [], []>} : vector<8x128xbf16>, vector<128x384xbf16>, vector<8x384xf32> -> vector<8x384xf32>
    %65 = vector.extract_strided_slice %61 {offsets = [0, 0], sizes = [8, 128], strides = [1, 1]} : vector<8x384xf32> to vector<8x128xf32>
    %66 = vector.extract_strided_slice %64 {offsets = [0, 0], sizes = [8, 128], strides = [1, 1]} : vector<8x384xf32> to vector<8x128xf32>
    %67 = arith.addf %65, %66 : vector<8x128xf32>
    %68 = arith.negf %67 : vector<8x128xf32>
    %69 = math.exp %68 : vector<8x128xf32>
    %cst_32 = arith.constant 1.000000e+00 : f32
    %70 = vector.broadcast %cst_32 : f32 to vector<8x128xf32>
    %71 = arith.addf %70, %69 : vector<8x128xf32>
    %72 = arith.divf %70, %71 : vector<8x128xf32>
    %73 = vector.extract_strided_slice %61 {offsets = [0, 128], sizes = [8, 128], strides = [1, 1]} : vector<8x384xf32> to vector<8x128xf32>
    %74 = vector.extract_strided_slice %64 {offsets = [0, 128], sizes = [8, 128], strides = [1, 1]} : vector<8x384xf32> to vector<8x128xf32>
    %75 = arith.addf %73, %74 : vector<8x128xf32>
    %76 = arith.negf %75 : vector<8x128xf32>
    %77 = math.exp %76 : vector<8x128xf32>
    %cst_33 = arith.constant 1.000000e+00 : f32
    %78 = vector.broadcast %cst_33 : f32 to vector<8x128xf32>
    %79 = arith.addf %78, %77 : vector<8x128xf32>
    %80 = arith.divf %78, %79 : vector<8x128xf32>
    %81 = vector.extract_strided_slice %61 {offsets = [0, 256], sizes = [8, 128], strides = [1, 1]} : vector<8x384xf32> to vector<8x128xf32>
    %82 = vector.extract_strided_slice %64 {offsets = [0, 256], sizes = [8, 128], strides = [1, 1]} : vector<8x384xf32> to vector<8x128xf32>
    %83 = vector.broadcast %12 : vector<1x128xf32> to vector<8x128xf32>
    %84 = arith.addf %82, %83 : vector<8x128xf32>
    %85 = arith.mulf %72, %84 : vector<8x128xf32>
    %86 = arith.addf %81, %85 : vector<8x128xf32>
    %87 = math.tanh %86 : vector<8x128xf32>
    %cst_34 = arith.constant 1.000000e+00 : f32
    %88 = vector.broadcast %cst_34 : f32 to vector<8x128xf32>
    %89 = arith.subf %88, %80 : vector<8x128xf32>
    %90 = arith.mulf %89, %87 : vector<8x128xf32>
    %91 = arith.mulf %80, %53 : vector<8x128xf32>
    %92 = arith.addf %90, %91 : vector<8x128xf32>
    %c1_i32 = arith.constant 1 : i32
    %93 = arith.addi %14, %c1_i32 : i32
    %94 = vector.broadcast %93 : i32 to vector<8x1xi32>
    %95 = arith.cmpi slt, %94, %13 : vector<8x1xi32>
    %96 = vector.shape_cast %95 : vector<8x1xi1> to vector<8x1xi1>
    %97 = vector.broadcast %96 : vector<8x1xi1> to vector<8x128xi1>
    %98 = arith.select %97, %92, %53 : vector<8x128xi1>, vector<8x128xf32>
    %cst_35 = arith.constant 0.000000e+00 : f32
    %99 = vector.shape_cast %95 : vector<8x1xi1> to vector<8x1xi1>
    %100 = vector.broadcast %99 : vector<8x1xi1> to vector<8x128xi1>
    %101 = vector.broadcast %cst_35 : f32 to vector<8x128xf32>
    %102 = arith.select %100, %92, %101 : vector<8x128xi1>, vector<8x128xf32>
    %c1 = arith.constant 1 : index
    %c0_36 = arith.constant 0 : index
    %c0_37 = arith.constant 0 : index
    %103 = vector.load %arg8[%c1, %c0_36, %c0_37] : memref<8x8x128xf32, #tpu.memory_space<vmem>>, vector<1x8x128xf32>
    %104 = vector.shape_cast %103 : vector<1x8x128xf32> to vector<8x128xf32>
    %105 = vector.shape_cast %102 : vector<8x128xf32> to vector<1x8x128xf32>
    tpu.vector_store %arg8[%c1, %c0_36, %c0_37], %105 {strides = array<i32>} : memref<8x8x128xf32, #tpu.memory_space<vmem>>, vector<1x8x128xf32>,
    %c16 = arith.constant 16 : index
    %c0_38 = arith.constant 0 : index
    %106 = vector.load %arg10[%c16, %c0_38] : memref<64x384xf32, #tpu.memory_space<vmem>>, vector<8x384xf32>
    %107 = arith.truncf %98 : vector<8x128xf32> to vector<8x128xbf16>
    %c0_39 = arith.constant 0 : index
    %c0_40 = arith.constant 0 : index
    %108 = vector.load %arg5[%c0_39, %c0_40] : memref<128x384xbf16, #tpu.memory_space<vmem>>, vector<128x384xbf16>
    %cst_41 = arith.constant dense<0.000000e+00> : vector<8x384xf32>
    %109 = tpu.matmul %107, %108, %cst_41 {dimension_numbers = #tpu.dot_dimension_numbers<[1], [0], [0], [1], [0, 0, 1, 1], [], []>} : vector<8x128xbf16>, vector<128x384xbf16>, vector<8x384xf32> -> vector<8x384xf32>
    %110 = vector.extract_strided_slice %106 {offsets = [0, 0], sizes = [8, 128], strides = [1, 1]} : vector<8x384xf32> to vector<8x128xf32>
    %111 = vector.extract_strided_slice %109 {offsets = [0, 0], sizes = [8, 128], strides = [1, 1]} : vector<8x384xf32> to vector<8x128xf32>
    %112 = arith.addf %110, %111 : vector<8x128xf32>
    %113 = arith.negf %112 : vector<8x128xf32>
    %114 = math.exp %113 : vector<8x128xf32>
    %cst_42 = arith.constant 1.000000e+00 : f32
    %115 = vector.broadcast %cst_42 : f32 to vector<8x128xf32>
    %116 = arith.addf %115, %114 : vector<8x128xf32>
    %117 = arith.divf %115, %116 : vector<8x128xf32>
    %118 = vector.extract_strided_slice %106 {offsets = [0, 128], sizes = [8, 128], strides = [1, 1]} : vector<8x384xf32> to vector<8x128xf32>
    %119 = vector.extract_strided_slice %109 {offsets = [0, 128], sizes = [8, 128], strides = [1, 1]} : vector<8x384xf32> to vector<8x128xf32>
    %120 = arith.addf %118, %119 : vector<8x128xf32>
    %121 = arith.negf %120 : vector<8x128xf32>
    %122 = math.exp %121 : vector<8x128xf32>
    %cst_43 = arith.constant 1.000000e+00 : f32
    %123 = vector.broadcast %cst_43 : f32 to vector<8x128xf32>
    %124 = arith.addf %123, %122 : vector<8x128xf32>
    %125 = arith.divf %123, %124 : vector<8x128xf32>
    %126 = vector.extract_strided_slice %106 {offsets = [0, 256], sizes = [8, 128], strides = [1, 1]} : vector<8x384xf32> to vector<8x128xf32>
    %127 = vector.extract_strided_slice %109 {offsets = [0, 256], sizes = [8, 128], strides = [1, 1]} : vector<8x384xf32> to vector<8x128xf32>
    %128 = vector.broadcast %12 : vector<1x128xf32> to vector<8x128xf32>
    %129 = arith.addf %127, %128 : vector<8x128xf32>
    %130 = arith.mulf %117, %129 : vector<8x128xf32>
    %131 = arith.addf %126, %130 : vector<8x128xf32>
    %132 = math.tanh %131 : vector<8x128xf32>
    %cst_44 = arith.constant 1.000000e+00 : f32
    %133 = vector.broadcast %cst_44 : f32 to vector<8x128xf32>
    %134 = arith.subf %133, %125 : vector<8x128xf32>
    %135 = arith.mulf %134, %132 : vector<8x128xf32>
    %136 = arith.mulf %125, %98 : vector<8x128xf32>
    %137 = arith.addf %135, %136 : vector<8x128xf32>
    %c2_i32 = arith.constant 2 : i32
    %138 = arith.addi %14, %c2_i32 : i32
    %139 = vector.broadcast %138 : i32 to vector<8x1xi32>
    %140 = arith.cmpi slt, %139, %13 : vector<8x1xi32>
    %141 = vector.shape_cast %140 : vector<8x1xi1> to vector<8x1xi1>
    %142 = vector.broadcast %141 : vector<8x1xi1> to vector<8x128xi1>
    %143 = arith.select %142, %137, %98 : vector<8x128xi1>, vector<8x128xf32>
    %cst_45 = arith.constant 0.000000e+00 : f32
    %144 = vector.shape_cast %140 : vector<8x1xi1> to vector<8x1xi1>
    %145 = vector.broadcast %144 : vector<8x1xi1> to vector<8x128xi1>
    %146 = vector.broadcast %cst_45 : f32 to vector<8x128xf32>
    %147 = arith.select %145, %137, %146 : vector<8x128xi1>, vector<8x128xf32>
    %c2 = arith.constant 2 : index
    %c0_46 = arith.constant 0 : index
    %c0_47 = arith.constant 0 : index
    %148 = vector.load %arg8[%c2, %c0_46, %c0_47] : memref<8x8x128xf32, #tpu.memory_space<vmem>>, vector<1x8x128xf32>
    %149 = vector.shape_cast %148 : vector<1x8x128xf32> to vector<8x128xf32>
    %150 = vector.shape_cast %147 : vector<8x128xf32> to vector<1x8x128xf32>
    tpu.vector_store %arg8[%c2, %c0_46, %c0_47], %150 {strides = array<i32>} : memref<8x8x128xf32, #tpu.memory_space<vmem>>, vector<1x8x128xf32>,
    %c24 = arith.constant 24 : index
    %c0_48 = arith.constant 0 : index
    %151 = vector.load %arg10[%c24, %c0_48] : memref<64x384xf32, #tpu.memory_space<vmem>>, vector<8x384xf32>
    %152 = arith.truncf %143 : vector<8x128xf32> to vector<8x128xbf16>
    %c0_49 = arith.constant 0 : index
    %c0_50 = arith.constant 0 : index
    %153 = vector.load %arg5[%c0_49, %c0_50] : memref<128x384xbf16, #tpu.memory_space<vmem>>, vector<128x384xbf16>
    %cst_51 = arith.constant dense<0.000000e+00> : vector<8x384xf32>
    %154 = tpu.matmul %152, %153, %cst_51 {dimension_numbers = #tpu.dot_dimension_numbers<[1], [0], [0], [1], [0, 0, 1, 1], [], []>} : vector<8x128xbf16>, vector<128x384xbf16>, vector<8x384xf32> -> vector<8x384xf32>
    %155 = vector.extract_strided_slice %151 {offsets = [0, 0], sizes = [8, 128], strides = [1, 1]} : vector<8x384xf32> to vector<8x128xf32>
    %156 = vector.extract_strided_slice %154 {offsets = [0, 0], sizes = [8, 128], strides = [1, 1]} : vector<8x384xf32> to vector<8x128xf32>
    %157 = arith.addf %155, %156 : vector<8x128xf32>
    %158 = arith.negf %157 : vector<8x128xf32>
    %159 = math.exp %158 : vector<8x128xf32>
    %cst_52 = arith.constant 1.000000e+00 : f32
    %160 = vector.broadcast %cst_52 : f32 to vector<8x128xf32>
    %161 = arith.addf %160, %159 : vector<8x128xf32>
    %162 = arith.divf %160, %161 : vector<8x128xf32>
    %163 = vector.extract_strided_slice %151 {offsets = [0, 128], sizes = [8, 128], strides = [1, 1]} : vector<8x384xf32> to vector<8x128xf32>
    %164 = vector.extract_strided_slice %154 {offsets = [0, 128], sizes = [8, 128], strides = [1, 1]} : vector<8x384xf32> to vector<8x128xf32>
    %165 = arith.addf %163, %164 : vector<8x128xf32>
    %166 = arith.negf %165 : vector<8x128xf32>
    %167 = math.exp %166 : vector<8x128xf32>
    %cst_53 = arith.constant 1.000000e+00 : f32
    %168 = vector.broadcast %cst_53 : f32 to vector<8x128xf32>
    %169 = arith.addf %168, %167 : vector<8x128xf32>
    %170 = arith.divf %168, %169 : vector<8x128xf32>
    %171 = vector.extract_strided_slice %151 {offsets = [0, 256], sizes = [8, 128], strides = [1, 1]} : vector<8x384xf32> to vector<8x128xf32>
    %172 = vector.extract_strided_slice %154 {offsets = [0, 256], sizes = [8, 128], strides = [1, 1]} : vector<8x384xf32> to vector<8x128xf32>
    %173 = vector.broadcast %12 : vector<1x128xf32> to vector<8x128xf32>
    %174 = arith.addf %172, %173 : vector<8x128xf32>
    %175 = arith.mulf %162, %174 : vector<8x128xf32>
    %176 = arith.addf %171, %175 : vector<8x128xf32>
    %177 = math.tanh %176 : vector<8x128xf32>
    %cst_54 = arith.constant 1.000000e+00 : f32
    %178 = vector.broadcast %cst_54 : f32 to vector<8x128xf32>
    %179 = arith.subf %178, %170 : vector<8x128xf32>
    %180 = arith.mulf %179, %177 : vector<8x128xf32>
    %181 = arith.mulf %170, %143 : vector<8x128xf32>
    %182 = arith.addf %180, %181 : vector<8x128xf32>
    %c3_i32 = arith.constant 3 : i32
    %183 = arith.addi %14, %c3_i32 : i32
    %184 = vector.broadcast %183 : i32 to vector<8x1xi32>
    %185 = arith.cmpi slt, %184, %13 : vector<8x1xi32>
    %186 = vector.shape_cast %185 : vector<8x1xi1> to vector<8x1xi1>
    %187 = vector.broadcast %186 : vector<8x1xi1> to vector<8x128xi1>
    %188 = arith.select %187, %182, %143 : vector<8x128xi1>, vector<8x128xf32>
    %cst_55 = arith.constant 0.000000e+00 : f32
    %189 = vector.shape_cast %185 : vector<8x1xi1> to vector<8x1xi1>
    %190 = vector.broadcast %189 : vector<8x1xi1> to vector<8x128xi1>
    %191 = vector.broadcast %cst_55 : f32 to vector<8x128xf32>
    %192 = arith.select %190, %182, %191 : vector<8x128xi1>, vector<8x128xf32>
    %c3 = arith.constant 3 : index
    %c0_56 = arith.constant 0 : index
    %c0_57 = arith.constant 0 : index
    %193 = vector.load %arg8[%c3, %c0_56, %c0_57] : memref<8x8x128xf32, #tpu.memory_space<vmem>>, vector<1x8x128xf32>
    %194 = vector.shape_cast %193 : vector<1x8x128xf32> to vector<8x128xf32>
    %195 = vector.shape_cast %192 : vector<8x128xf32> to vector<1x8x128xf32>
    tpu.vector_store %arg8[%c3, %c0_56, %c0_57], %195 {strides = array<i32>} : memref<8x8x128xf32, #tpu.memory_space<vmem>>, vector<1x8x128xf32>,
    %c32 = arith.constant 32 : index
    %c0_58 = arith.constant 0 : index
    %196 = vector.load %arg10[%c32, %c0_58] : memref<64x384xf32, #tpu.memory_space<vmem>>, vector<8x384xf32>
    %197 = arith.truncf %188 : vector<8x128xf32> to vector<8x128xbf16>
    %c0_59 = arith.constant 0 : index
    %c0_60 = arith.constant 0 : index
    %198 = vector.load %arg5[%c0_59, %c0_60] : memref<128x384xbf16, #tpu.memory_space<vmem>>, vector<128x384xbf16>
    %cst_61 = arith.constant dense<0.000000e+00> : vector<8x384xf32>
    %199 = tpu.matmul %197, %198, %cst_61 {dimension_numbers = #tpu.dot_dimension_numbers<[1], [0], [0], [1], [0, 0, 1, 1], [], []>} : vector<8x128xbf16>, vector<128x384xbf16>, vector<8x384xf32> -> vector<8x384xf32>
    %200 = vector.extract_strided_slice %196 {offsets = [0, 0], sizes = [8, 128], strides = [1, 1]} : vector<8x384xf32> to vector<8x128xf32>
    %201 = vector.extract_strided_slice %199 {offsets = [0, 0], sizes = [8, 128], strides = [1, 1]} : vector<8x384xf32> to vector<8x128xf32>
    %202 = arith.addf %200, %201 : vector<8x128xf32>
    %203 = arith.negf %202 : vector<8x128xf32>
    %204 = math.exp %203 : vector<8x128xf32>
    %cst_62 = arith.constant 1.000000e+00 : f32
    %205 = vector.broadcast %cst_62 : f32 to vector<8x128xf32>
    %206 = arith.addf %205, %204 : vector<8x128xf32>
    %207 = arith.divf %205, %206 : vector<8x128xf32>
    %208 = vector.extract_strided_slice %196 {offsets = [0, 128], sizes = [8, 128], strides = [1, 1]} : vector<8x384xf32> to vector<8x128xf32>
    %209 = vector.extract_strided_slice %199 {offsets = [0, 128], sizes = [8, 128], strides = [1, 1]} : vector<8x384xf32> to vector<8x128xf32>
    %210 = arith.addf %208, %209 : vector<8x128xf32>
    %211 = arith.negf %210 : vector<8x128xf32>
    %212 = math.exp %211 : vector<8x128xf32>
    %cst_63 = arith.constant 1.000000e+00 : f32
    %213 = vector.broadcast %cst_63 : f32 to vector<8x128xf32>
    %214 = arith.addf %213, %212 : vector<8x128xf32>
    %215 = arith.divf %213, %214 : vector<8x128xf32>
    %216 = vector.extract_strided_slice %196 {offsets = [0, 256], sizes = [8, 128], strides = [1, 1]} : vector<8x384xf32> to vector<8x128xf32>
    %217 = vector.extract_strided_slice %199 {offsets = [0, 256], sizes = [8, 128], strides = [1, 1]} : vector<8x384xf32> to vector<8x128xf32>
    %218 = vector.broadcast %12 : vector<1x128xf32> to vector<8x128xf32>
    %219 = arith.addf %217, %218 : vector<8x128xf32>
    %220 = arith.mulf %207, %219 : vector<8x128xf32>
    %221 = arith.addf %216, %220 : vector<8x128xf32>
    %222 = math.tanh %221 : vector<8x128xf32>
    %cst_64 = arith.constant 1.000000e+00 : f32
    %223 = vector.broadcast %cst_64 : f32 to vector<8x128xf32>
    %224 = arith.subf %223, %215 : vector<8x128xf32>
    %225 = arith.mulf %224, %222 : vector<8x128xf32>
    %226 = arith.mulf %215, %188 : vector<8x128xf32>
    %227 = arith.addf %225, %226 : vector<8x128xf32>
    %c4_i32 = arith.constant 4 : i32
    %228 = arith.addi %14, %c4_i32 : i32
    %229 = vector.broadcast %228 : i32 to vector<8x1xi32>
    %230 = arith.cmpi slt, %229, %13 : vector<8x1xi32>
    %231 = vector.shape_cast %230 : vector<8x1xi1> to vector<8x1xi1>
    %232 = vector.broadcast %231 : vector<8x1xi1> to vector<8x128xi1>
    %233 = arith.select %232, %227, %188 : vector<8x128xi1>, vector<8x128xf32>
    %cst_65 = arith.constant 0.000000e+00 : f32
    %234 = vector.shape_cast %230 : vector<8x1xi1> to vector<8x1xi1>
    %235 = vector.broadcast %234 : vector<8x1xi1> to vector<8x128xi1>
    %236 = vector.broadcast %cst_65 : f32 to vector<8x128xf32>
    %237 = arith.select %235, %227, %236 : vector<8x128xi1>, vector<8x128xf32>
    %c4 = arith.constant 4 : index
    %c0_66 = arith.constant 0 : index
    %c0_67 = arith.constant 0 : index
    %238 = vector.load %arg8[%c4, %c0_66, %c0_67] : memref<8x8x128xf32, #tpu.memory_space<vmem>>, vector<1x8x128xf32>
    %239 = vector.shape_cast %238 : vector<1x8x128xf32> to vector<8x128xf32>
    %240 = vector.shape_cast %237 : vector<8x128xf32> to vector<1x8x128xf32>
    tpu.vector_store %arg8[%c4, %c0_66, %c0_67], %240 {strides = array<i32>} : memref<8x8x128xf32, #tpu.memory_space<vmem>>, vector<1x8x128xf32>,
    %c40 = arith.constant 40 : index
    %c0_68 = arith.constant 0 : index
    %241 = vector.load %arg10[%c40, %c0_68] : memref<64x384xf32, #tpu.memory_space<vmem>>, vector<8x384xf32>
    %242 = arith.truncf %233 : vector<8x128xf32> to vector<8x128xbf16>
    %c0_69 = arith.constant 0 : index
    %c0_70 = arith.constant 0 : index
    %243 = vector.load %arg5[%c0_69, %c0_70] : memref<128x384xbf16, #tpu.memory_space<vmem>>, vector<128x384xbf16>
    %cst_71 = arith.constant dense<0.000000e+00> : vector<8x384xf32>
    %244 = tpu.matmul %242, %243, %cst_71 {dimension_numbers = #tpu.dot_dimension_numbers<[1], [0], [0], [1], [0, 0, 1, 1], [], []>} : vector<8x128xbf16>, vector<128x384xbf16>, vector<8x384xf32> -> vector<8x384xf32>
    %245 = vector.extract_strided_slice %241 {offsets = [0, 0], sizes = [8, 128], strides = [1, 1]} : vector<8x384xf32> to vector<8x128xf32>
    %246 = vector.extract_strided_slice %244 {offsets = [0, 0], sizes = [8, 128], strides = [1, 1]} : vector<8x384xf32> to vector<8x128xf32>
    %247 = arith.addf %245, %246 : vector<8x128xf32>
    %248 = arith.negf %247 : vector<8x128xf32>
    %249 = math.exp %248 : vector<8x128xf32>
    %cst_72 = arith.constant 1.000000e+00 : f32
    %250 = vector.broadcast %cst_72 : f32 to vector<8x128xf32>
    %251 = arith.addf %250, %249 : vector<8x128xf32>
    %252 = arith.divf %250, %251 : vector<8x128xf32>
    %253 = vector.extract_strided_slice %241 {offsets = [0, 128], sizes = [8, 128], strides = [1, 1]} : vector<8x384xf32> to vector<8x128xf32>
    %254 = vector.extract_strided_slice %244 {offsets = [0, 128], sizes = [8, 128], strides = [1, 1]} : vector<8x384xf32> to vector<8x128xf32>
    %255 = arith.addf %253, %254 : vector<8x128xf32>
    %256 = arith.negf %255 : vector<8x128xf32>
    %257 = math.exp %256 : vector<8x128xf32>
    %cst_73 = arith.constant 1.000000e+00 : f32
    %258 = vector.broadcast %cst_73 : f32 to vector<8x128xf32>
    %259 = arith.addf %258, %257 : vector<8x128xf32>
    %260 = arith.divf %258, %259 : vector<8x128xf32>
    %261 = vector.extract_strided_slice %241 {offsets = [0, 256], sizes = [8, 128], strides = [1, 1]} : vector<8x384xf32> to vector<8x128xf32>
    %262 = vector.extract_strided_slice %244 {offsets = [0, 256], sizes = [8, 128], strides = [1, 1]} : vector<8x384xf32> to vector<8x128xf32>
    %263 = vector.broadcast %12 : vector<1x128xf32> to vector<8x128xf32>
    %264 = arith.addf %262, %263 : vector<8x128xf32>
    %265 = arith.mulf %252, %264 : vector<8x128xf32>
    %266 = arith.addf %261, %265 : vector<8x128xf32>
    %267 = math.tanh %266 : vector<8x128xf32>
    %cst_74 = arith.constant 1.000000e+00 : f32
    %268 = vector.broadcast %cst_74 : f32 to vector<8x128xf32>
    %269 = arith.subf %268, %260 : vector<8x128xf32>
    %270 = arith.mulf %269, %267 : vector<8x128xf32>
    %271 = arith.mulf %260, %233 : vector<8x128xf32>
    %272 = arith.addf %270, %271 : vector<8x128xf32>
    %c5_i32 = arith.constant 5 : i32
    %273 = arith.addi %14, %c5_i32 : i32
    %274 = vector.broadcast %273 : i32 to vector<8x1xi32>
    %275 = arith.cmpi slt, %274, %13 : vector<8x1xi32>
    %276 = vector.shape_cast %275 : vector<8x1xi1> to vector<8x1xi1>
    %277 = vector.broadcast %276 : vector<8x1xi1> to vector<8x128xi1>
    %278 = arith.select %277, %272, %233 : vector<8x128xi1>, vector<8x128xf32>
    %cst_75 = arith.constant 0.000000e+00 : f32
    %279 = vector.shape_cast %275 : vector<8x1xi1> to vector<8x1xi1>
    %280 = vector.broadcast %279 : vector<8x1xi1> to vector<8x128xi1>
    %281 = vector.broadcast %cst_75 : f32 to vector<8x128xf32>
    %282 = arith.select %280, %272, %281 : vector<8x128xi1>, vector<8x128xf32>
    %c5 = arith.constant 5 : index
    %c0_76 = arith.constant 0 : index
    %c0_77 = arith.constant 0 : index
    %283 = vector.load %arg8[%c5, %c0_76, %c0_77] : memref<8x8x128xf32, #tpu.memory_space<vmem>>, vector<1x8x128xf32>
    %284 = vector.shape_cast %283 : vector<1x8x128xf32> to vector<8x128xf32>
    %285 = vector.shape_cast %282 : vector<8x128xf32> to vector<1x8x128xf32>
    tpu.vector_store %arg8[%c5, %c0_76, %c0_77], %285 {strides = array<i32>} : memref<8x8x128xf32, #tpu.memory_space<vmem>>, vector<1x8x128xf32>,
    %c48 = arith.constant 48 : index
    %c0_78 = arith.constant 0 : index
    %286 = vector.load %arg10[%c48, %c0_78] : memref<64x384xf32, #tpu.memory_space<vmem>>, vector<8x384xf32>
    %287 = arith.truncf %278 : vector<8x128xf32> to vector<8x128xbf16>
    %c0_79 = arith.constant 0 : index
    %c0_80 = arith.constant 0 : index
    %288 = vector.load %arg5[%c0_79, %c0_80] : memref<128x384xbf16, #tpu.memory_space<vmem>>, vector<128x384xbf16>
    %cst_81 = arith.constant dense<0.000000e+00> : vector<8x384xf32>
    %289 = tpu.matmul %287, %288, %cst_81 {dimension_numbers = #tpu.dot_dimension_numbers<[1], [0], [0], [1], [0, 0, 1, 1], [], []>} : vector<8x128xbf16>, vector<128x384xbf16>, vector<8x384xf32> -> vector<8x384xf32>
    %290 = vector.extract_strided_slice %286 {offsets = [0, 0], sizes = [8, 128], strides = [1, 1]} : vector<8x384xf32> to vector<8x128xf32>
    %291 = vector.extract_strided_slice %289 {offsets = [0, 0], sizes = [8, 128], strides = [1, 1]} : vector<8x384xf32> to vector<8x128xf32>
    %292 = arith.addf %290, %291 : vector<8x128xf32>
    %293 = arith.negf %292 : vector<8x128xf32>
    %294 = math.exp %293 : vector<8x128xf32>
    %cst_82 = arith.constant 1.000000e+00 : f32
    %295 = vector.broadcast %cst_82 : f32 to vector<8x128xf32>
    %296 = arith.addf %295, %294 : vector<8x128xf32>
    %297 = arith.divf %295, %296 : vector<8x128xf32>
    %298 = vector.extract_strided_slice %286 {offsets = [0, 128], sizes = [8, 128], strides = [1, 1]} : vector<8x384xf32> to vector<8x128xf32>
    %299 = vector.extract_strided_slice %289 {offsets = [0, 128], sizes = [8, 128], strides = [1, 1]} : vector<8x384xf32> to vector<8x128xf32>
    %300 = arith.addf %298, %299 : vector<8x128xf32>
    %301 = arith.negf %300 : vector<8x128xf32>
    %302 = math.exp %301 : vector<8x128xf32>
    %cst_83 = arith.constant 1.000000e+00 : f32
    %303 = vector.broadcast %cst_83 : f32 to vector<8x128xf32>
    %304 = arith.addf %303, %302 : vector<8x128xf32>
    %305 = arith.divf %303, %304 : vector<8x128xf32>
    %306 = vector.extract_strided_slice %286 {offsets = [0, 256], sizes = [8, 128], strides = [1, 1]} : vector<8x384xf32> to vector<8x128xf32>
    %307 = vector.extract_strided_slice %289 {offsets = [0, 256], sizes = [8, 128], strides = [1, 1]} : vector<8x384xf32> to vector<8x128xf32>
    %308 = vector.broadcast %12 : vector<1x128xf32> to vector<8x128xf32>
    %309 = arith.addf %307, %308 : vector<8x128xf32>
    %310 = arith.mulf %297, %309 : vector<8x128xf32>
    %311 = arith.addf %306, %310 : vector<8x128xf32>
    %312 = math.tanh %311 : vector<8x128xf32>
    %cst_84 = arith.constant 1.000000e+00 : f32
    %313 = vector.broadcast %cst_84 : f32 to vector<8x128xf32>
    %314 = arith.subf %313, %305 : vector<8x128xf32>
    %315 = arith.mulf %314, %312 : vector<8x128xf32>
    %316 = arith.mulf %305, %278 : vector<8x128xf32>
    %317 = arith.addf %315, %316 : vector<8x128xf32>
    %c6_i32 = arith.constant 6 : i32
    %318 = arith.addi %14, %c6_i32 : i32
    %319 = vector.broadcast %318 : i32 to vector<8x1xi32>
    %320 = arith.cmpi slt, %319, %13 : vector<8x1xi32>
    %321 = vector.shape_cast %320 : vector<8x1xi1> to vector<8x1xi1>
    %322 = vector.broadcast %321 : vector<8x1xi1> to vector<8x128xi1>
    %323 = arith.select %322, %317, %278 : vector<8x128xi1>, vector<8x128xf32>
    %cst_85 = arith.constant 0.000000e+00 : f32
    %324 = vector.shape_cast %320 : vector<8x1xi1> to vector<8x1xi1>
    %325 = vector.broadcast %324 : vector<8x1xi1> to vector<8x128xi1>
    %326 = vector.broadcast %cst_85 : f32 to vector<8x128xf32>
    %327 = arith.select %325, %317, %326 : vector<8x128xi1>, vector<8x128xf32>
    %c6 = arith.constant 6 : index
    %c0_86 = arith.constant 0 : index
    %c0_87 = arith.constant 0 : index
    %328 = vector.load %arg8[%c6, %c0_86, %c0_87] : memref<8x8x128xf32, #tpu.memory_space<vmem>>, vector<1x8x128xf32>
    %329 = vector.shape_cast %328 : vector<1x8x128xf32> to vector<8x128xf32>
    %330 = vector.shape_cast %327 : vector<8x128xf32> to vector<1x8x128xf32>
    tpu.vector_store %arg8[%c6, %c0_86, %c0_87], %330 {strides = array<i32>} : memref<8x8x128xf32, #tpu.memory_space<vmem>>, vector<1x8x128xf32>,
    %c56 = arith.constant 56 : index
    %c0_88 = arith.constant 0 : index
    %331 = vector.load %arg10[%c56, %c0_88] : memref<64x384xf32, #tpu.memory_space<vmem>>, vector<8x384xf32>
    %332 = arith.truncf %323 : vector<8x128xf32> to vector<8x128xbf16>
    %c0_89 = arith.constant 0 : index
    %c0_90 = arith.constant 0 : index
    %333 = vector.load %arg5[%c0_89, %c0_90] : memref<128x384xbf16, #tpu.memory_space<vmem>>, vector<128x384xbf16>
    %cst_91 = arith.constant dense<0.000000e+00> : vector<8x384xf32>
    %334 = tpu.matmul %332, %333, %cst_91 {dimension_numbers = #tpu.dot_dimension_numbers<[1], [0], [0], [1], [0, 0, 1, 1], [], []>} : vector<8x128xbf16>, vector<128x384xbf16>, vector<8x384xf32> -> vector<8x384xf32>
    %335 = vector.extract_strided_slice %331 {offsets = [0, 0], sizes = [8, 128], strides = [1, 1]} : vector<8x384xf32> to vector<8x128xf32>
    %336 = vector.extract_strided_slice %334 {offsets = [0, 0], sizes = [8, 128], strides = [1, 1]} : vector<8x384xf32> to vector<8x128xf32>
    %337 = arith.addf %335, %336 : vector<8x128xf32>
    %338 = arith.negf %337 : vector<8x128xf32>
    %339 = math.exp %338 : vector<8x128xf32>
    %cst_92 = arith.constant 1.000000e+00 : f32
    %340 = vector.broadcast %cst_92 : f32 to vector<8x128xf32>
    %341 = arith.addf %340, %339 : vector<8x128xf32>
    %342 = arith.divf %340, %341 : vector<8x128xf32>
    %343 = vector.extract_strided_slice %331 {offsets = [0, 128], sizes = [8, 128], strides = [1, 1]} : vector<8x384xf32> to vector<8x128xf32>
    %344 = vector.extract_strided_slice %334 {offsets = [0, 128], sizes = [8, 128], strides = [1, 1]} : vector<8x384xf32> to vector<8x128xf32>
    %345 = arith.addf %343, %344 : vector<8x128xf32>
    %346 = arith.negf %345 : vector<8x128xf32>
    %347 = math.exp %346 : vector<8x128xf32>
    %cst_93 = arith.constant 1.000000e+00 : f32
    %348 = vector.broadcast %cst_93 : f32 to vector<8x128xf32>
    %349 = arith.addf %348, %347 : vector<8x128xf32>
    %350 = arith.divf %348, %349 : vector<8x128xf32>
    %351 = vector.extract_strided_slice %331 {offsets = [0, 256], sizes = [8, 128], strides = [1, 1]} : vector<8x384xf32> to vector<8x128xf32>
    %352 = vector.extract_strided_slice %334 {offsets = [0, 256], sizes = [8, 128], strides = [1, 1]} : vector<8x384xf32> to vector<8x128xf32>
    %353 = vector.broadcast %12 : vector<1x128xf32> to vector<8x128xf32>
    %354 = arith.addf %352, %353 : vector<8x128xf32>
    %355 = arith.mulf %342, %354 : vector<8x128xf32>
    %356 = arith.addf %351, %355 : vector<8x128xf32>
    %357 = math.tanh %356 : vector<8x128xf32>
    %cst_94 = arith.constant 1.000000e+00 : f32
    %358 = vector.broadcast %cst_94 : f32 to vector<8x128xf32>
    %359 = arith.subf %358, %350 : vector<8x128xf32>
    %360 = arith.mulf %359, %357 : vector<8x128xf32>
    %361 = arith.mulf %350, %323 : vector<8x128xf32>
    %362 = arith.addf %360, %361 : vector<8x128xf32>
    %c7_i32 = arith.constant 7 : i32
    %363 = arith.addi %14, %c7_i32 : i32
    %364 = vector.broadcast %363 : i32 to vector<8x1xi32>
    %365 = arith.cmpi slt, %364, %13 : vector<8x1xi32>
    %366 = vector.shape_cast %365 : vector<8x1xi1> to vector<8x1xi1>
    %367 = vector.broadcast %366 : vector<8x1xi1> to vector<8x128xi1>
    %368 = arith.select %367, %362, %323 : vector<8x128xi1>, vector<8x128xf32>
    %cst_95 = arith.constant 0.000000e+00 : f32
    %369 = vector.shape_cast %365 : vector<8x1xi1> to vector<8x1xi1>
    %370 = vector.broadcast %369 : vector<8x1xi1> to vector<8x128xi1>
    %371 = vector.broadcast %cst_95 : f32 to vector<8x128xf32>
    %372 = arith.select %370, %362, %371 : vector<8x128xi1>, vector<8x128xf32>
    %c7 = arith.constant 7 : index
    %c0_96 = arith.constant 0 : index
    %c0_97 = arith.constant 0 : index
    %373 = vector.load %arg8[%c7, %c0_96, %c0_97] : memref<8x8x128xf32, #tpu.memory_space<vmem>>, vector<1x8x128xf32>
    %374 = vector.shape_cast %373 : vector<1x8x128xf32> to vector<8x128xf32>
    %375 = vector.shape_cast %372 : vector<8x128xf32> to vector<1x8x128xf32>
    tpu.vector_store %arg8[%c7, %c0_96, %c0_97], %375 {strides = array<i32>} : memref<8x8x128xf32, #tpu.memory_space<vmem>>, vector<1x8x128xf32>,
    %c0_98 = arith.constant 0 : index
    %c0_99 = arith.constant 0 : index
    %376 = vector.load %arg11[%c0_98, %c0_99] : memref<8x128xf32, #tpu.memory_space<vmem>>, vector<8x128xf32>
    tpu.vector_store %arg11[%c0_98, %c0_99], %368 {strides = array<i32>} : memref<8x128xf32, #tpu.memory_space<vmem>>, vector<8x128xf32>,
    %c0_100 = arith.constant 0 : index
    %c0_101 = arith.constant 0 : index
    %377 = vector.load %arg9[%c0_100, %c0_101] : memref<8x128xf32, #tpu.memory_space<vmem>>, vector<8x128xf32>
    tpu.vector_store %arg9[%c0_100, %c0_101], %368 {strides = array<i32>} : memref<8x128xf32, #tpu.memory_space<vmem>>, vector<8x128xf32>,
    return
  }
  func.func @transform_0(%arg0: i32, %arg1: i32) -> (i32, i32) {
    %c0_i32 = arith.constant 0 : i32
    %c0_i32_0 = arith.constant 0 : i32
    return %arg0, %c0_i32 : i32, i32
  }
  func.func @transform_1(%arg0: i32, %arg1: i32) -> (i32, i32, i32) {
    %c0_i32 = arith.constant 0 : i32
    %c0_i32_0 = arith.constant 0 : i32
    return %arg1, %arg0, %c0_i32 : i32, i32, i32
  }
  func.func @transform_2(%arg0: i32, %arg1: i32) -> (i32, i32) {
    %c0_i32 = arith.constant 0 : i32
    %c0_i32_0 = arith.constant 0 : i32
    %c0_i32_1 = arith.constant 0 : i32
    return %c0_i32, %c0_i32_0 : i32, i32
  }
  func.func @transform_3(%arg0: i32, %arg1: i32) -> (i32, i32) {
    %c0_i32 = arith.constant 0 : i32
    %c0_i32_0 = arith.constant 0 : i32
    %c0_i32_1 = arith.constant 0 : i32
    return %c0_i32, %c0_i32_0 : i32, i32
  }
  func.func @transform_4(%arg0: i32, %arg1: i32) -> (i32, i32) {
    %c0_i32 = arith.constant 0 : i32
    %c0_i32_0 = arith.constant 0 : i32
    %c0_i32_1 = arith.constant 0 : i32
    return %c0_i32, %c0_i32_0 : i32, i32
  }
  func.func @transform_5(%arg0: i32, %arg1: i32) -> (i32, i32) {
    %c0_i32 = arith.constant 0 : i32
    %c0_i32_0 = arith.constant 0 : i32
    %c0_i32_1 = arith.constant 0 : i32
    return %c0_i32, %c0_i32_0 : i32, i32
  }
  func.func @transform_6(%arg0: i32, %arg1: i32) -> (i32, i32, i32) {
    %c0_i32 = arith.constant 0 : i32
    %c0_i32_0 = arith.constant 0 : i32
    return %arg1, %arg0, %c0_i32 : i32, i32, i32
  }
  func.func @transform_7(%arg0: i32, %arg1: i32) -> (i32, i32) {
    %c0_i32 = arith.constant 0 : i32
    %c0_i32_0 = arith.constant 0 : i32
    return %arg0, %c0_i32 : i32, i32
  }
}

</mosaic_0001>

<llo_original>
// kernel: tpu_custom_call.1
$region0: #{tpu_custom_call.1}
  #allocation0 [shape = 'u32[]', space=smem, size = 0x4, offset = 0x4, fixed_abs, tag = 'smem constant byte address 0x4 - core index']
  #allocation1 [shape = 'u32[72,128]{1,0:T(1,128)}', space=vmem, size = 0x9000, scoped, tag = 'internal scratch']
  #allocation2 [shape = 'f32[64,384]{1,0:T(8,128)}', space=vmem, size = 0x18000, scoped, tag = 'scratch operand']
  #allocation3 [shape = 'f32[8,128]{1,0:T(8,128)}', space=vmem, size = 0x1000, scoped, tag = 'scratch operand']
  %s0 = inlined_call_operand.vmem [shape: s32[8,1], index: 0, kind: input, shape index: {}]
  %s1 = inlined_call_operand.hbm [shape: f32[8,8,32], index: 1, kind: input, shape index: {}]
  %s2 = inlined_call_operand.hbm [shape: bf16[32,384], index: 2, kind: input, shape index: {}]
  %s3 = inlined_call_operand.hbm [shape: bf16[128,384], index: 3, kind: input, shape index: {}]
  %s4 = inlined_call_operand.vmem [shape: f32[1,384], index: 4, kind: input, shape index: {}]
  %s5 = inlined_call_operand.vmem [shape: f32[1,128], index: 5, kind: input, shape index: {}]
  %s6 = inlined_call_operand.hbm [shape: f32[8,8,128], index: 6, kind: output, shape index: {0}]
  %s7 = inlined_call_operand.hbm [shape: f32[8,128], index: 7, kind: output, shape index: {1}]
  %8 = xla_tuple %s6, %s7
  %s9 = sld [smem:[#allocation0]]
  $region58: #{tpu_custom_call.1} parent=0
    _
  %s11 = ssub.s32 1, %s9
  %s12 = scalar_select 0, %s11, %s9
  $region1: #{tpu_custom_call.1} parent=0
    #allocation4 [shape = 'u8[32768]{0}', space=vmem, size = 0x8000, scoped, tag = 'input window, operand 1, single buffered']
    #allocation5 [shape = 's32[1]{0}', space=sflag, size = 0x4, scoped, tag = 'scoped memory for tpu_custom_call.1']
    #allocation6 [shape = 's32[1]{0}', space=sflag, size = 0x4, scoped, tag = 'scoped memory for tpu_custom_call.1']
    #allocation7 [shape = 'u8[24576]{0}', space=vmem, size = 0x6000, scoped, tag = 'input window, operand 2, single buffered']
    #allocation8 [shape = 's32[1]{0}', space=sflag, size = 0x4, scoped, tag = 'scoped memory for tpu_custom_call.1']
    #allocation9 [shape = 'u8[98304]{0}', space=vmem, size = 0x18000, scoped, tag = 'input window, operand 3, single buffered']
    #allocation10 [shape = 'u8[32768]{0}', space=vmem, size = 0x8000, scoped, tag = 'output window, operand 0, single buffered']
    #allocation11 [shape = 'u8[4096]{0}', space=vmem, size = 0x1000, scoped, tag = 'output window, operand 1, single buffered']
    #allocation12 [shape = 's32[1]{0}', space=sflag, size = 0x4, scoped, tag = 'scoped memory for tpu_custom_call.1']
    %13 = vsyncpa [#allocation5], 0
    %14 = vsyncpa [#allocation8], 0
    %15 = vsyncpa [#allocation6], 0
    %16 = vsyncpa [#allocation12], 0
    // Predicated region
    $region2: #{tpu_custom_call.1} parent=1 // pred_check
      _
    $region3: #{tpu_custom_call.1} parent=1 // pred_check_branch
      %18 = sbr.rel (0) target = $region5
    $region4: #{tpu_custom_call.1} parent=1 // pred_region
      _
    $region5: #{tpu_custom_call.1} parent=1 // pred_fallthru
      _
    // Predicated region
    $region6: #{tpu_custom_call.1} parent=1 // pred_check
      _
    $region7: #{tpu_custom_call.1} parent=1 // pred_check_branch
      %20 = sbr.rel (0) target = $region9
    $region8: #{tpu_custom_call.1} parent=1 // pred_region
      %22 = vsyncadd [#allocation5], 0
      %s23 = sshll.u32 %s1, 4
      %s24 = int_to_ptr.hbm [resolvable:$true] %s23
      %s25 = sshll.u32 [#allocation4], 4
      %s26 = int_to_ptr.vmem [resolvable:$true] %s25
      %31 = dma.hbm_to_vmem [thread:$0]  %s24, 1024, %s26, [#allocation5], 128, 128, 8
    $region9: #{tpu_custom_call.1} parent=1 // pred_fallthru
      _
    // Predicated region
    $region10: #{tpu_custom_call.1} parent=1 // pred_check
      _
    $region11: #{tpu_custom_call.1} parent=1 // pred_check_branch
      %33 = sbr.rel (0) target = $region13
    $region12: #{tpu_custom_call.1} parent=1 // pred_region
      %35 = vsyncadd [#allocation8], 0
      %s36 = sshll.u32 %s2, 4
      %s37 = int_to_ptr.hbm [resolvable:$true] %s36
      %s38 = sshll.u32 [#allocation7], 4
      %s39 = int_to_ptr.vmem [resolvable:$true] %s38
      %44 = dma.hbm_to_vmem [thread:$0]  %s37, 768, %s39, [#allocation8], 192, 192, 12
    $region13: #{tpu_custom_call.1} parent=1 // pred_fallthru
      _
    // Predicated region
    $region14: #{tpu_custom_call.1} parent=1 // pred_check
      _
    $region15: #{tpu_custom_call.1} parent=1 // pred_check_branch
      %46 = sbr.rel (0) target = $region17
    $region16: #{tpu_custom_call.1} parent=1 // pred_region
      %48 = vsyncadd [#allocation8], 0
      %s49 = sshll.u32 %s3, 4
      %s50 = int_to_ptr.hbm [resolvable:$true] %s49
      %s51 = sshll.u32 [#allocation9], 4
      %s52 = int_to_ptr.vmem [resolvable:$true] %s51
      %57 = dma.hbm_to_vmem [thread:$0]  %s50, 3072, %s52, [#allocation8], 192, 192, 12
    $region17: #{tpu_custom_call.1} parent=1 // pred_fallthru
      _
    // Predicated region
    $region18: #{tpu_custom_call.1} parent=1 // pred_check
      _
    $region19: #{tpu_custom_call.1} parent=1 // pred_check_branch
      %59 = sbr.rel (0) target = $region21
    $region20: #{tpu_custom_call.1} parent=1 // pred_region
      _
    $region21: #{tpu_custom_call.1} parent=1 // pred_fallthru
      _
    // Predicated region
    $region22: #{tpu_custom_call.1} parent=1 // pred_check
      _
    $region23: #{tpu_custom_call.1} parent=1 // pred_check_branch
      %61 = sbr.rel (0) target = $region25
    $region24: #{tpu_custom_call.1} parent=1 // pred_region
      _
    $region25: #{tpu_custom_call.1} parent=1 // pred_fallthru
      _
    // Predicated region
    $region26: #{tpu_custom_call.1} parent=1 // pred_check
      _
    $region27: #{tpu_custom_call.1} parent=1 // pred_check_branch
      %63 = sbr.rel (0) target = $region29
    $region28: #{tpu_custom_call.1} parent=1 // pred_region
      %65 = dma.done [#allocation5], 1024
    $region29: #{tpu_custom_call.1} parent=1 // pred_fallthru
      _
    // Predicated region
    $region30: #{tpu_custom_call.1} parent=1 // pred_check
      _
    $region31: #{tpu_custom_call.1} parent=1 // pred_check_branch
      %67 = sbr.rel (0) target = $region33
    $region32: #{tpu_custom_call.1} parent=1 // pred_region
      %69 = dma.done [#allocation8], 768
    $region33: #{tpu_custom_call.1} parent=1 // pred_fallthru
      _
    // Predicated region
    $region34: #{tpu_custom_call.1} parent=1 // pred_check
      _
    $region35: #{tpu_custom_call.1} parent=1 // pred_check_branch
      %71 = sbr.rel (0) target = $region37
    $region36: #{tpu_custom_call.1} parent=1 // pred_region
      %73 = dma.done [#allocation8], 3072
    $region37: #{tpu_custom_call.1} parent=1 // pred_fallthru
      _
    %p75 = scmp.eq.s32.totalorder 0, 0
    // Predicated region
    $region38: #{tpu_custom_call.1} parent=1 // pred_check
      %p76 = pneg %p75
    $region39: #{tpu_custom_call.1} parent=1 // pred_check_branch
      %78 = sbr.rel (%p76) target = $region41
    $region40: #{tpu_custom_call.1} parent=1 // pred_region
      %79 = vst [vmem:[#allocation3] sm:$0xff] 0.0
    $region41: #{tpu_custom_call.1} parent=1 // pred_fallthru
      _
    %v80 = vld [vmem:[#allocation4] sm:$0xff]
    %v81 = vld [vmem:[#allocation4 + $0x8] sm:$0xff]
    %v82 = vld [vmem:[#allocation4 + $0x10] sm:$0xff]
    %v83 = vld [vmem:[#allocation4 + $0x18] sm:$0xff]
    %v84 = vld [vmem:[#allocation4 + $0x20] sm:$0xff]
    %v85 = vld [vmem:[#allocation4 + $0x28] sm:$0xff]
    %v86 = vld [vmem:[#allocation4 + $0x30] sm:$0xff]
    %v87 = vld [vmem:[#allocation4 + $0x38] sm:$0xff]
    %v88 = vpack.c.bf16 %v81, %v80
    %v89 = vpack.c.bf16 %v83, %v82
    %v90 = vpack.c.bf16 %v85, %v84
    %v91 = vpack.c.bf16 %v87, %v86
    %v92 = vld [vmem:[#allocation7] sm:$0xff]
    %v93 = vld [vmem:[#allocation7 + $0x8] sm:$0xf]
    %v94 = vld [vmem:[#allocation7 + $0xc] sm:$0xff]
    %v95 = vld [vmem:[#allocation7 + $0x14] sm:$0xf]
    %v96 = vld [vmem:[#allocation7 + $0x18] sm:$0xff]
    %v97 = vld [vmem:[#allocation7 + $0x20] sm:$0xf]
    %v98 = vld [vmem:[#allocation7 + $0x24] sm:$0xff]
    %v99 = vld [vmem:[#allocation7 + $0x2c] sm:$0xf]
    %v100 = vld [vmem:[%s4] sm:$0x7]
    %v102 = vperm.slane %v100, 0
    %v103 = vperm.slane %v100, 1
    %v104 = vperm.slane %v100, 2
    %v116 = vunpack.c.l.b16 %v92
    %v117 = vunpack.c.h.b16 %v92
    %v118 = vunpack.c.l.b16 %v93
    %v119 = vunpack.c.l.b16 %v94
    %v120 = vunpack.c.h.b16 %v94
    %v121 = vunpack.c.l.b16 %v95
    %v122 = vunpack.c.l.b16 %v96
    %v123 = vunpack.c.h.b16 %v96
    %v124 = vunpack.c.l.b16 %v97
    %v125 = vunpack.c.l.b16 %v98
    %v126 = vunpack.c.h.b16 %v98
    %v127 = vunpack.c.l.b16 %v99
    %v128 = vpack.c.b16 %v119, %v116
    %v129 = vpack.c.b16 %v120, %v117
    %v130 = vpack.c.b16 %v121, %v118
    %v131 = vpack.c.b16 %v125, %v122
    %v132 = vpack.c.b16 %v126, %v123
    %v133 = vpack.c.b16 %v127, %v124
    %vm140 = vcmask 261120
    %v142 = vsel %vm140, %v88, 0
    %v145 = vsel %vm140, %v89, 0
    %v148 = vsel %vm140, %v90, 0
    %v151 = vsel %vm140, %v91, 0
    %153 = vmatpush.bf16.msra.mxu0 0
    %154 = vmatpush.bf16.msra.mxu0 0
    %155 = vmatpush.bf16.msra.mxu0 0
    %156 = vmatpush.bf16.msra.mxu0 0
    %157 = vmatpush.bf16.msra.mxu0 0
    %158 = vmatpush.bf16.msra.mxu0 0
    %159 = vmatpush.bf16.msra.mxu0 %v131
    %160 = vmatpush.bf16.msra.mxu0 %v128
    %161 = vmatmul.bf16.gmra.mxu0 %v142
    %v162 = vpop.f32.mrf.mxu0
    %v163 = vadd.f32 %v102, %v162
    %v164 = vpop.f32.mrf.mxu0
    %v165 = vadd.f32 %v102, %v164
    %166 = vmatmul.bf16.gmra.mxu0 %v145
    %v167 = vpop.f32.mrf.mxu0
    %v168 = vadd.f32 %v102, %v167
    %v169 = vpop.f32.mrf.mxu0
    %v170 = vadd.f32 %v102, %v169
    %171 = vmatmul.bf16.gmra.mxu0 %v148
    %v172 = vpop.f32.mrf.mxu0
    %v173 = vadd.f32 %v102, %v172
    %v174 = vpop.f32.mrf.mxu0
    %v175 = vadd.f32 %v102, %v174
    %176 = vmatmul.bf16.gmra.mxu0 %v151
    %v177 = vpop.f32.mrf.mxu0
    %v178 = vadd.f32 %v102, %v177
    %v179 = vpop.f32.mrf.mxu0
    %v180 = vadd.f32 %v102, %v179
    %181 = vdwg.mxu0
    %182 = vmatpush.bf16.msra.mxu0 0
    %183 = vmatpush.bf16.msra.mxu0 0
    %184 = vmatpush.bf16.msra.mxu0 0
    %185 = vmatpush.bf16.msra.mxu0 0
    %186 = vmatpush.bf16.msra.mxu0 0
    %187 = vmatpush.bf16.msra.mxu0 0
    %188 = vmatpush.bf16.msra.mxu0 %v132
    %189 = vmatpush.bf16.msra.mxu0 %v129
    %190 = vmatmul.bf16.gmra.mxu0 %v142
    %v191 = vpop.f32.mrf.mxu0
    %v192 = vadd.f32 %v103, %v191
    %v193 = vpop.f32.mrf.mxu0
    %v194 = vadd.f32 %v103, %v193
    %195 = vmatmul.bf16.gmra.mxu0 %v145
    %v196 = vpop.f32.mrf.mxu0
    %v197 = vadd.f32 %v103, %v196
    %v198 = vpop.f32.mrf.mxu0
    %v199 = vadd.f32 %v103, %v198
    %200 = vmatmul.bf16.gmra.mxu0 %v148
    %v201 = vpop.f32.mrf.mxu0
    %v202 = vadd.f32 %v103, %v201
    %v203 = vpop.f32.mrf.mxu0
    %v204 = vadd.f32 %v103, %v203
    %205 = vmatmul.bf16.gmra.mxu0 %v151
    %v206 = vpop.f32.mrf.mxu0
    %v207 = vadd.f32 %v103, %v206
    %v208 = vpop.f32.mrf.mxu0
    %v209 = vadd.f32 %v103, %v208
    %210 = vdwg.mxu0
    %211 = vmatpush.bf16.msra.mxu0 0
    %212 = vmatpush.bf16.msra.mxu0 0
    %213 = vmatpush.bf16.msra.mxu0 0
    %214 = vmatpush.bf16.msra.mxu0 0
    %215 = vmatpush.bf16.msra.mxu0 0
    %216 = vmatpush.bf16.msra.mxu0 0
    %217 = vmatpush.bf16.msra.mxu0 %v133
    %218 = vmatpush.bf16.msra.mxu0 %v130
    %219 = vmatmul.bf16.gmra.mxu0 %v142
    %v220 = vpop.f32.mrf.mxu0
    %v221 = vadd.f32 %v104, %v220
    %v222 = vpop.f32.mrf.mxu0
    %v223 = vadd.f32 %v104, %v222
    %224 = vmatmul.bf16.gmra.mxu0 %v145
    %v225 = vpop.f32.mrf.mxu0
    %v226 = vadd.f32 %v104, %v225
    %v227 = vpop.f32.mrf.mxu0
    %v228 = vadd.f32 %v104, %v227
    %229 = vmatmul.bf16.gmra.mxu0 %v148
    %v230 = vpop.f32.mrf.mxu0
    %v231 = vadd.f32 %v104, %v230
    %v232 = vpop.f32.mrf.mxu0
    %v233 = vadd.f32 %v104, %v232
    %234 = vmatmul.bf16.gmra.mxu0 %v151
    %v235 = vpop.f32.mrf.mxu0
    %v236 = vadd.f32 %v104, %v235
    %v237 = vpop.f32.mrf.mxu0
    %v238 = vadd.f32 %v104, %v237
    %239 = vdwg.mxu0
    %240 = vst [vmem:[#allocation2] sm:$0xff] %v163
    %241 = vst [vmem:[#allocation2 + $0x8] sm:$0xff] %v192
    %242 = vst [vmem:[#allocation2 + $0x10] sm:$0xff] %v221
    %243 = vst [vmem:[#allocation2 + $0x18] sm:$0xff] %v165
    %244 = vst [vmem:[#allocation2 + $0x20] sm:$0xff] %v194
    %245 = vst [vmem:[#allocation2 + $0x28] sm:$0xff] %v223
    %246 = vst [vmem:[#allocation2 + $0x30] sm:$0xff] %v168
    %247 = vst [vmem:[#allocation2 + $0x38] sm:$0xff] %v197
    %248 = vst [vmem:[#allocation2 + $0x40] sm:$0xff] %v226
    %249 = vst [vmem:[#allocation2 + $0x48] sm:$0xff] %v170
    %250 = vst [vmem:[#allocation2 + $0x50] sm:$0xff] %v199
    %251 = vst [vmem:[#allocation2 + $0x58] sm:$0xff] %v228
    %252 = vst [vmem:[#allocation2 + $0x60] sm:$0xff] %v173
    %253 = vst [vmem:[#allocation2 + $0x68] sm:$0xff] %v202
    %254 = vst [vmem:[#allocation2 + $0x70] sm:$0xff] %v231
    %255 = vst [vmem:[#allocation2 + $0x78] sm:$0xff] %v175
    %256 = vst [vmem:[#allocation2 + $0x80] sm:$0xff] %v204
    %257 = vst [vmem:[#allocation2 + $0x88] sm:$0xff] %v233
    %258 = vst [vmem:[#allocation2 + $0x90] sm:$0xff] %v178
    %259 = vst [vmem:[#allocation2 + $0x98] sm:$0xff] %v207
    %260 = vst [vmem:[#allocation2 + $0xa0] sm:$0xff] %v236
    %261 = vst [vmem:[#allocation2 + $0xa8] sm:$0xff] %v180
    %262 = vst [vmem:[#allocation2 + $0xb0] sm:$0xff] %v209
    %263 = vst [vmem:[#allocation2 + $0xb8] sm:$0xff] %v238
    %v264 = vld [vmem:[%s5] sm:$0x1]
    %v265 = vld [vmem:[%s0] sm:$0xff]
    %s266 = smul.u32 0, 8
    %v267 = vld [vmem:[#allocation3] sm:$0xff]
    %v268 = vld [vmem:[#allocation2] sm:$0xff]
    %v269 = vld [vmem:[#allocation2 + $0x8] sm:$0xff]
    %v270 = vld [vmem:[#allocation2 + $0x10] sm:$0xff]
    %v271 = vpack.c.bf16 %v267, %v267
    %v272 = vld [vmem:[#allocation9] sm:$0xff]
    %v273 = vld [vmem:[#allocation9 + $0x8] sm:$0xf]
    %v274 = vld [vmem:[#allocation9 + $0xc] sm:$0xff]
    %v275 = vld [vmem:[#allocation9 + $0x14] sm:$0xf]
    %v276 = vld [vmem:[#allocation9 + $0x18] sm:$0xff]
    %v277 = vld [vmem:[#allocation9 + $0x20] sm:$0xf]
    %v278 = vld [vmem:[#allocation9 + $0x24] sm:$0xff]
    %v279 = vld [vmem:[#allocation9 + $0x2c] sm:$0xf]
    %v280 = vld [vmem:[#allocation9 + $0x30] sm:$0xff]
    %v281 = vld [vmem:[#allocation9 + $0x38] sm:$0xf]
    %v282 = vld [vmem:[#allocation9 + $0x3c] sm:$0xff]
    %v283 = vld [vmem:[#allocation9 + $0x44] sm:$0xf]
    %v284 = vld [vmem:[#allocation9 + $0x48] sm:$0xff]
    %v285 = vld [vmem:[#allocation9 + $0x50] sm:$0xf]
    %v286 = vld [vmem:[#allocation9 + $0x54] sm:$0xff]
    %v287 = vld [vmem:[#allocation9 + $0x5c] sm:$0xf]
    %v288 = vld [vmem:[#allocation9 + $0x60] sm:$0xff]
    %v289 = vld [vmem:[#allocation9 + $0x68] sm:$0xf]
    %v290 = vld [vmem:[#allocation9 + $0x6c] sm:$0xff]
    %v291 = vld [vmem:[#allocation9 + $0x74] sm:$0xf]
    %v292 = vld [vmem:[#allocation9 + $0x78] sm:$0xff]
    %v293 = vld [vmem:[#allocation9 + $0x80] sm:$0xf]
    %v294 = vld [vmem:[#allocation9 + $0x84] sm:$0xff]
    %v295 = vld [vmem:[#allocation9 + $0x8c] sm:$0xf]
    %v296 = vld [vmem:[#allocation9 + $0x90] sm:$0xff]
    %v297 = vld [vmem:[#allocation9 + $0x98] sm:$0xf]
    %v298 = vld [vmem:[#allocation9 + $0x9c] sm:$0xff]
    %v299 = vld [vmem:[#allocation9 + $0xa4] sm:$0xf]
    %v300 = vld [vmem:[#allocation9 + $0xa8] sm:$0xff]
    %v301 = vld [vmem:[#allocation9 + $0xb0] sm:$0xf]
    %v302 = vld [vmem:[#allocation9 + $0xb4] sm:$0xff]
    %v303 = vld [vmem:[#allocation9 + $0xbc] sm:$0xf]
    %v336 = vunpack.c.l.b16 %v272
    %v337 = vunpack.c.h.b16 %v272
    %v338 = vunpack.c.l.b16 %v273
    %v339 = vunpack.c.l.b16 %v274
    %v340 = vunpack.c.h.b16 %v274
    %v341 = vunpack.c.l.b16 %v275
    %v342 = vunpack.c.l.b16 %v276
    %v343 = vunpack.c.h.b16 %v276
    %v344 = vunpack.c.l.b16 %v277
    %v345 = vunpack.c.l.b16 %v278
    %v346 = vunpack.c.h.b16 %v278
    %v347 = vunpack.c.l.b16 %v279
    %v348 = vunpack.c.l.b16 %v280
    %v349 = vunpack.c.h.b16 %v280
    %v350 = vunpack.c.l.b16 %v281
    %v351 = vunpack.c.l.b16 %v282
    %v352 = vunpack.c.h.b16 %v282
    %v353 = vunpack.c.l.b16 %v283
    %v354 = vunpack.c.l.b16 %v284
    %v355 = vunpack.c.h.b16 %v284
    %v356 = vunpack.c.l.b16 %v285
    %v357 = vunpack.c.l.b16 %v286
    %v358 = vunpack.c.h.b16 %v286
    %v359 = vunpack.c.l.b16 %v287
    %v360 = vunpack.c.l.b16 %v288
    %v361 = vunpack.c.h.b16 %v288
    %v362 = vunpack.c.l.b16 %v289
    %v363 = vunpack.c.l.b16 %v290
    %v364 = vunpack.c.h.b16 %v290
    %v365 = vunpack.c.l.b16 %v291
    %v366 = vunpack.c.l.b16 %v292
    %v367 = vunpack.c.h.b16 %v292
    %v368 = vunpack.c.l.b16 %v293
    %v369 = vunpack.c.l.b16 %v294
    %v370 = vunpack.c.h.b16 %v294
    %v371 = vunpack.c.l.b16 %v295
    %v372 = vunpack.c.l.b16 %v296
    %v373 = vunpack.c.h.b16 %v296
    %v374 = vunpack.c.l.b16 %v297
    %v375 = vunpack.c.l.b16 %v298
    %v376 = vunpack.c.h.b16 %v298
    %v377 = vunpack.c.l.b16 %v299
    %v378 = vunpack.c.l.b16 %v300
    %v379 = vunpack.c.h.b16 %v300
    %v380 = vunpack.c.l.b16 %v301
    %v381 = vunpack.c.l.b16 %v302
    %v382 = vunpack.c.h.b16 %v302
    %v383 = vunpack.c.l.b16 %v303
    %v384 = vpack.c.b16 %v339, %v336
    %v385 = vpack.c.b16 %v340, %v337
    %v386 = vpack.c.b16 %v341, %v338
    %v387 = vpack.c.b16 %v345, %v342
    %v388 = vpack.c.b16 %v346, %v343
    %v389 = vpack.c.b16 %v347, %v344
    %v390 = vpack.c.b16 %v351, %v348
    %v391 = vpack.c.b16 %v352, %v349
    %v392 = vpack.c.b16 %v353, %v350
    %v393 = vpack.c.b16 %v357, %v354
    %v394 = vpack.c.b16 %v358, %v355
    %v395 = vpack.c.b16 %v359, %v356
    %v396 = vpack.c.b16 %v363, %v360
    %v397 = vpack.c.b16 %v364, %v361
    %v398 = vpack.c.b16 %v365, %v362
    %v399 = vpack.c.b16 %v369, %v366
    %v400 = vpack.c.b16 %v370, %v367
    %v401 = vpack.c.b16 %v371, %v368
    %v402 = vpack.c.b16 %v375, %v372
    %v403 = vpack.c.b16 %v376, %v373
    %v404 = vpack.c.b16 %v377, %v374
    %v405 = vpack.c.b16 %v381, %v378
    %v406 = vpack.c.b16 %v382, %v379
    %v407 = vpack.c.b16 %v383, %v380
    %432 = vmatpush.bf16.msra.mxu0 %v405
    %433 = vmatpush.bf16.msra.mxu0 %v402
    %434 = vmatpush.bf16.msra.mxu0 %v399
    %435 = vmatpush.bf16.msra.mxu0 %v396
    %436 = vmatpush.bf16.msra.mxu0 %v393
    %437 = vmatpush.bf16.msra.mxu0 %v390
    %438 = vmatpush.bf16.msra.mxu0 %v387
    %439 = vmatpush.bf16.msra.mxu0 %v384
    %440 = vmatmul.bf16.gmra.mxu0 %v271
    %v441 = vpop.f32.mrf.mxu0
    %v442 = vadd.f32 0.0, %v441
    %v443 = vpop.f32.mrf.mxu0
    %444 = vdwg.mxu0
    %445 = vmatpush.bf16.msra.mxu0 %v406
    %446 = vmatpush.bf16.msra.mxu0 %v403
    %447 = vmatpush.bf16.msra.mxu0 %v400
    %448 = vmatpush.bf16.msra.mxu0 %v397
    %449 = vmatpush.bf16.msra.mxu0 %v394
    %450 = vmatpush.bf16.msra.mxu0 %v391
    %451 = vmatpush.bf16.msra.mxu0 %v388
    %452 = vmatpush.bf16.msra.mxu0 %v385
    %453 = vmatmul.bf16.gmra.mxu0 %v271
    %v454 = vpop.f32.mrf.mxu0
    %v455 = vadd.f32 0.0, %v454
    %v456 = vpop.f32.mrf.mxu0
    %457 = vdwg.mxu0
    %458 = vmatpush.bf16.msra.mxu0 %v407
    %459 = vmatpush.bf16.msra.mxu0 %v404
    %460 = vmatpush.bf16.msra.mxu0 %v401
    %461 = vmatpush.bf16.msra.mxu0 %v398
    %462 = vmatpush.bf16.msra.mxu0 %v395
    %463 = vmatpush.bf16.msra.mxu0 %v392
    %464 = vmatpush.bf16.msra.mxu0 %v389
    %465 = vmatpush.bf16.msra.mxu0 %v386
    %466 = vmatmul.bf16.gmra.mxu0 %v271
    %v467 = vpop.f32.mrf.mxu0
    %v468 = vadd.f32 0.0, %v467
    %v469 = vpop.f32.mrf.mxu0
    %470 = vdwg.mxu0
    %v471 = vadd.f32 %v268, %v442
    %v472 = vxor.u32 %v471, 2147483648
    %v473 = vmul.f32 %v472, 1.442695
    %v474 = vpow.pop %v473
    %v475 = vadd.f32 %v474, 1.0
    %v476 = vrcp.pop %v475
    %v477 = vmul.f32 %v475, %v476
    %v478 = vsub.f32 1.0, %v477
    %v479 = vmul.f32 %v476, %v478
    %v480 = vadd.f32 %v476, %v479
    %vm481 = vweird.f32 %v475
    %vm482 = vweird.f32 %v476
    %vm483 = vmor %vm481, %vm482
    %v484 = vsel %vm483, %v476, %v480
    %v485 = vand.u32 2147483647, %v475
    %vm486 = vcmp.eq.f32.partialorder %v485, 8.507059e+37
    %v487 = vand.u32 %v475, 2147483648
    %v488 = vor.u32 1.1754944e-38, %v487
    %v489 = vsel %vm486, %v488, %v484
    %v490 = vmul.f32 1.0, %v489
    %v491 = vadd.f32 %v269, %v455
    %v492 = vxor.u32 %v491, 2147483648
    %v493 = vmul.f32 %v492, 1.442695
    %v494 = vpow.pop %v493
    %v495 = vadd.f32 %v494, 1.0
    %v496 = vrcp.pop %v495
    %v497 = vmul.f32 %v495, %v496
    %v498 = vsub.f32 1.0, %v497
    %v499 = vmul.f32 %v496, %v498
    %v500 = vadd.f32 %v496, %v499
    %vm501 = vweird.f32 %v495
    %vm502 = vweird.f32 %v496
    %vm503 = vmor %vm501, %vm502
    %v504 = vsel %vm503, %v496, %v500
    %v505 = vand.u32 2147483647, %v495
    %vm506 = vcmp.eq.f32.partialorder %v505, 8.507059e+37
    %v507 = vand.u32 %v495, 2147483648
    %v508 = vor.u32 1.1754944e-38, %v507
    %v509 = vsel %vm506, %v508, %v504
    %v510 = vmul.f32 1.0, %v509
    %v512 = vperm.slane %v264, 0
    %v514 = vadd.f32 %v468, %v512
    %v515 = vmul.f32 %v490, %v514
    %v516 = vadd.f32 %v270, %v515
    %v517 = vtanh.pop %v516
    %v518 = vsub.f32 1.0, %v510
    %v519 = vmul.f32 %v518, %v517
    %v520 = vmul.f32 %v510, %v267
    %v521 = vadd.f32 %v519, %v520
    %v522 = vstv %s266
    %vm523 = vcmp.lt.s32.totalorder %v522, %v265
    %v524 = vsel %vm523, 1, 0
    %525 = vset.pattern.permute.xlu0 0
    %526 = vperm.xlu0 %525, %v524
    %v527 = vpop.permute.xlu0 %526
    %vm528 = vcmp.eq.s32.totalorder %v527, 1
    %v529 = vsel %vm528, %v521, %v267
    %v530 = vsel %vm528, %v521, 0.0
    %531 = vst [vmem:[#allocation10] sm:$0xff] %v530
    %v532 = vld [vmem:[#allocation2 + $0x18] sm:$0xff]
    %v533 = vld [vmem:[#allocation2 + $0x20] sm:$0xff]
    %v534 = vld [vmem:[#allocation2 + $0x28] sm:$0xff]
    %v535 = vpack.c.bf16 %v529, %v529
    %v536 = vld [vmem:[#allocation9] sm:$0xff]
    %v537 = vld [vmem:[#allocation9 + $0x8] sm:$0xf]
    %v538 = vld [vmem:[#allocation9 + $0xc] sm:$0xff]
    %v539 = vld [vmem:[#allocation9 + $0x14] sm:$0xf]
    %v540 = vld [vmem:[#allocation9 + $0x18] sm:$0xff]
    %v541 = vld [vmem:[#allocation9 + $0x20] sm:$0xf]
    %v542 = vld [vmem:[#allocation9 + $0x24] sm:$0xff]
    %v543 = vld [vmem:[#allocation9 + $0x2c] sm:$0xf]
    %v544 = vld [vmem:[#allocation9 + $0x30] sm:$0xff]
    %v545 = vld [vmem:[#allocation9 + $0x38] sm:$0xf]
    %v546 = vld [vmem:[#allocation9 + $0x3c] sm:$0xff]
    %v547 = vld [vmem:[#allocation9 + $0x44] sm:$0xf]
    %v548 = vld [vmem:[#allocation9 + $0x48] sm:$0xff]
    %v549 = vld [vmem:[#allocation9 + $0x50] sm:$0xf]
    %v550 = vld [vmem:[#allocation9 + $0x54] sm:$0xff]
    %v551 = vld [vmem:[#allocation9 + $0x5c] sm:$0xf]
    %v552 = vld [vmem:[#allocation9 + $0x60] sm:$0xff]
    %v553 = vld [vmem:[#allocation9 + $0x68] sm:$0xf]
    %v554 = vld [vmem:[#allocation9 + $0x6c] sm:$0xff]
    %v555 = vld [vmem:[#allocation9 + $0x74] sm:$0xf]
    %v556 = vld [vmem:[#allocation9 + $0x78] sm:$0xff]
    %v557 = vld [vmem:[#allocation9 + $0x80] sm:$0xf]
    %v558 = vld [vmem:[#allocation9 + $0x84] sm:$0xff]
    %v559 = vld [vmem:[#allocation9 + $0x8c] sm:$0xf]
    %v560 = vld [vmem:[#allocation9 + $0x90] sm:$0xff]
    %v561 = vld [vmem:[#allocation9 + $0x98] sm:$0xf]
    %v562 = vld [vmem:[#allocation9 + $0x9c] sm:$0xff]
    %v563 = vld [vmem:[#allocation9 + $0xa4] sm:$0xf]
    %v564 = vld [vmem:[#allocation9 + $0xa8] sm:$0xff]
    %v565 = vld [vmem:[#allocation9 + $0xb0] sm:$0xf]
    %v566 = vld [vmem:[#allocation9 + $0xb4] sm:$0xff]
    %v567 = vld [vmem:[#allocation9 + $0xbc] sm:$0xf]
    %v600 = vunpack.c.l.b16 %v536
    %v601 = vunpack.c.h.b16 %v536
    %v602 = vunpack.c.l.b16 %v537
    %v603 = vunpack.c.l.b16 %v538
    %v604 = vunpack.c.h.b16 %v538
    %v605 = vunpack.c.l.b16 %v539
    %v606 = vunpack.c.l.b16 %v540
    %v607 = vunpack.c.h.b16 %v540
    %v608 = vunpack.c.l.b16 %v541
    %v609 = vunpack.c.l.b16 %v542
    %v610 = vunpack.c.h.b16 %v542
    %v611 = vunpack.c.l.b16 %v543
    %v612 = vunpack.c.l.b16 %v544
    %v613 = vunpack.c.h.b16 %v544
    %v614 = vunpack.c.l.b16 %v545
    %v615 = vunpack.c.l.b16 %v546
    %v616 = vunpack.c.h.b16 %v546
    %v617 = vunpack.c.l.b16 %v547
    %v618 = vunpack.c.l.b16 %v548
    %v619 = vunpack.c.h.b16 %v548
    %v620 = vunpack.c.l.b16 %v549
    %v621 = vunpack.c.l.b16 %v550
    %v622 = vunpack.c.h.b16 %v550
    %v623 = vunpack.c.l.b16 %v551
    %v624 = vunpack.c.l.b16 %v552
    %v625 = vunpack.c.h.b16 %v552
    %v626 = vunpack.c.l.b16 %v553
    %v627 = vunpack.c.l.b16 %v554
    %v628 = vunpack.c.h.b16 %v554
    %v629 = vunpack.c.l.b16 %v555
    %v630 = vunpack.c.l.b16 %v556
    %v631 = vunpack.c.h.b16 %v556
    %v632 = vunpack.c.l.b16 %v557
    %v633 = vunpack.c.l.b16 %v558
    %v634 = vunpack.c.h.b16 %v558
    %v635 = vunpack.c.l.b16 %v559
    %v636 = vunpack.c.l.b16 %v560
    %v637 = vunpack.c.h.b16 %v560
    %v638 = vunpack.c.l.b16 %v561
    %v639 = vunpack.c.l.b16 %v562
    %v640 = vunpack.c.h.b16 %v562
    %v641 = vunpack.c.l.b16 %v563
    %v642 = vunpack.c.l.b16 %v564
    %v643 = vunpack.c.h.b16 %v564
    %v644 = vunpack.c.l.b16 %v565
    %v645 = vunpack.c.l.b16 %v566
    %v646 = vunpack.c.h.b16 %v566
    %v647 = vunpack.c.l.b16 %v567
    %v648 = vpack.c.b16 %v603, %v600
    %v649 = vpack.c.b16 %v604, %v601
    %v650 = vpack.c.b16 %v605, %v602
    %v651 = vpack.c.b16 %v609, %v606
    %v652 = vpack.c.b16 %v610, %v607
    %v653 = vpack.c.b16 %v611, %v608
    %v654 = vpack.c.b16 %v615, %v612
    %v655 = vpack.c.b16 %v616, %v613
    %v656 = vpack.c.b16 %v617, %v614
    %v657 = vpack.c.b16 %v621, %v618
    %v658 = vpack.c.b16 %v622, %v619
    %v659 = vpack.c.b16 %v623, %v620
    %v660 = vpack.c.b16 %v627, %v624
    %v661 = vpack.c.b16 %v628, %v625
    %v662 = vpack.c.b16 %v629, %v626
    %v663 = vpack.c.b16 %v633, %v630
    %v664 = vpack.c.b16 %v634, %v631
    %v665 = vpack.c.b16 %v635, %v632
    %v666 = vpack.c.b16 %v639, %v636
    %v667 = vpack.c.b16 %v640, %v637
    %v668 = vpack.c.b16 %v641, %v638
    %v669 = vpack.c.b16 %v645, %v642
    %v670 = vpack.c.b16 %v646, %v643
    %v671 = vpack.c.b16 %v647, %v644
    %696 = vmatpush.bf16.msra.mxu0 %v669
    %697 = vmatpush.bf16.msra.mxu0 %v666
    %698 = vmatpush.bf16.msra.mxu0 %v663
    %699 = vmatpush.bf16.msra.mxu0 %v660
    %700 = vmatpush.bf16.msra.mxu0 %v657
    %701 = vmatpush.bf16.msra.mxu0 %v654
    %702 = vmatpush.bf16.msra.mxu0 %v651
    %703 = vmatpush.bf16.msra.mxu0 %v648
    %704 = vmatmul.bf16.gmra.mxu0 %v535
    %v705 = vpop.f32.mrf.mxu0
    %v706 = vadd.f32 0.0, %v705
    %v707 = vpop.f32.mrf.mxu0
    %708 = vdwg.mxu0
    %709 = vmatpush.bf16.msra.mxu0 %v670
    %710 = vmatpush.bf16.msra.mxu0 %v667
    %711 = vmatpush.bf16.msra.mxu0 %v664
    %712 = vmatpush.bf16.msra.mxu0 %v661
    %713 = vmatpush.bf16.msra.mxu0 %v658
    %714 = vmatpush.bf16.msra.mxu0 %v655
    %715 = vmatpush.bf16.msra.mxu0 %v652
    %716 = vmatpush.bf16.msra.mxu0 %v649
    %717 = vmatmul.bf16.gmra.mxu0 %v535
    %v718 = vpop.f32.mrf.mxu0
    %v719 = vadd.f32 0.0, %v718
    %v720 = vpop.f32.mrf.mxu0
    %721 = vdwg.mxu0
    %722 = vmatpush.bf16.msra.mxu0 %v671
    %723 = vmatpush.bf16.msra.mxu0 %v668
    %724 = vmatpush.bf16.msra.mxu0 %v665
    %725 = vmatpush.bf16.msra.mxu0 %v662
    %726 = vmatpush.bf16.msra.mxu0 %v659
    %727 = vmatpush.bf16.msra.mxu0 %v656
    %728 = vmatpush.bf16.msra.mxu0 %v653
    %729 = vmatpush.bf16.msra.mxu0 %v650
    %730 = vmatmul.bf16.gmra.mxu0 %v535
    %v731 = vpop.f32.mrf.mxu0
    %v732 = vadd.f32 0.0, %v731
    %v733 = vpop.f32.mrf.mxu0
    %734 = vdwg.mxu0
    %v735 = vadd.f32 %v532, %v706
    %v736 = vxor.u32 %v735, 2147483648
    %v737 = vmul.f32 %v736, 1.442695
    %v738 = vpow.pop %v737
    %v739 = vadd.f32 %v738, 1.0
    %v740 = vrcp.pop %v739
    %v741 = vmul.f32 %v739, %v740
    %v742 = vsub.f32 1.0, %v741
    %v743 = vmul.f32 %v740, %v742
    %v744 = vadd.f32 %v740, %v743
    %vm745 = vweird.f32 %v739
    %vm746 = vweird.f32 %v740
    %vm747 = vmor %vm745, %vm746
    %v748 = vsel %vm747, %v740, %v744
    %v749 = vand.u32 2147483647, %v739
    %vm750 = vcmp.eq.f32.partialorder %v749, 8.507059e+37
    %v751 = vand.u32 %v739, 2147483648
    %v752 = vor.u32 1.1754944e-38, %v751
    %v753 = vsel %vm750, %v752, %v748
    %v754 = vmul.f32 1.0, %v753
    %v755 = vadd.f32 %v533, %v719
    %v756 = vxor.u32 %v755, 2147483648
    %v757 = vmul.f32 %v756, 1.442695
    %v758 = vpow.pop %v757
    %v759 = vadd.f32 %v758, 1.0
    %v760 = vrcp.pop %v759
    %v761 = vmul.f32 %v759, %v760
    %v762 = vsub.f32 1.0, %v761
    %v763 = vmul.f32 %v760, %v762
    %v764 = vadd.f32 %v760, %v763
    %vm765 = vweird.f32 %v759
    %vm766 = vweird.f32 %v760
    %vm767 = vmor %vm765, %vm766
    %v768 = vsel %vm767, %v760, %v764
    %v769 = vand.u32 2147483647, %v759
    %vm770 = vcmp.eq.f32.partialorder %v769, 8.507059e+37
    %v771 = vand.u32 %v759, 2147483648
    %v772 = vor.u32 1.1754944e-38, %v771
    %v773 = vsel %vm770, %v772, %v768
    %v774 = vmul.f32 1.0, %v773
    %v775 = vadd.f32 %v732, %v512
    %v776 = vmul.f32 %v754, %v775
    %v777 = vadd.f32 %v534, %v776
    %v778 = vtanh.pop %v777
    %v779 = vsub.f32 1.0, %v774
    %v780 = vmul.f32 %v779, %v778
    %v781 = vmul.f32 %v774, %v529
    %v782 = vadd.f32 %v780, %v781
    %s783 = sadd.s32 %s266, 1
    %v784 = vstv %s783
    %vm785 = vcmp.lt.s32.totalorder %v784, %v265
    %v786 = vsel %vm785, 1, 0
    %787 = vset.pattern.permute.xlu0 0
    %788 = vperm.xlu0 %787, %v786
    %v789 = vpop.permute.xlu0 %788
    %vm790 = vcmp.eq.s32.totalorder %v789, 1
    %v791 = vsel %vm790, %v782, %v529
    %v792 = vsel %vm790, %v782, 0.0
    %s793 = scalar_lea.vmem [#allocation10], 8
    %794 = vst [vmem:[%s793] sm:$0xff] %v792
    %v795 = vld [vmem:[#allocation2 + $0x30] sm:$0xff]
    %v796 = vld [vmem:[#allocation2 + $0x38] sm:$0xff]
    %v797 = vld [vmem:[#allocation2 + $0x40] sm:$0xff]
    %v798 = vpack.c.bf16 %v791, %v791
    %v799 = vld [vmem:[#allocation9] sm:$0xff]
    %v800 = vld [vmem:[#allocation9 + $0x8] sm:$0xf]
    %v801 = vld [vmem:[#allocation9 + $0xc] sm:$0xff]
    %v802 = vld [vmem:[#allocation9 + $0x14] sm:$0xf]
    %v803 = vld [vmem:[#allocation9 + $0x18] sm:$0xff]
    %v804 = vld [vmem:[#allocation9 + $0x20] sm:$0xf]
    %v805 = vld [vmem:[#allocation9 + $0x24] sm:$0xff]
    %v806 = vld [vmem:[#allocation9 + $0x2c] sm:$0xf]
    %v807 = vld [vmem:[#allocation9 + $0x30] sm:$0xff]
    %v808 = vld [vmem:[#allocation9 + $0x38] sm:$0xf]
    %v809 = vld [vmem:[#allocation9 + $0x3c] sm:$0xff]
    %v810 = vld [vmem:[#allocation9 + $0x44] sm:$0xf]
    %v811 = vld [vmem:[#allocation9 + $0x48] sm:$0xff]
    %v812 = vld [vmem:[#allocation9 + $0x50] sm:$0xf]
    %v813 = vld [vmem:[#allocation9 + $0x54] sm:$0xff]
    %v814 = vld [vmem:[#allocation9 + $0x5c] sm:$0xf]
    %v815 = vld [vmem:[#allocation9 + $0x60] sm:$0xff]
    %v816 = vld [vmem:[#allocation9 + $0x68] sm:$0xf]
    %v817 = vld [vmem:[#allocation9 + $0x6c] sm:$0xff]
    %v818 = vld [vmem:[#allocation9 + $0x74] sm:$0xf]
    %v819 = vld [vmem:[#allocation9 + $0x78] sm:$0xff]
    %v820 = vld [vmem:[#allocation9 + $0x80] sm:$0xf]
    %v821 = vld [vmem:[#allocation9 + $0x84] sm:$0xff]
    %v822 = vld [vmem:[#allocation9 + $0x8c] sm:$0xf]
    %v823 = vld [vmem:[#allocation9 + $0x90] sm:$0xff]
    %v824 = vld [vmem:[#allocation9 + $0x98] sm:$0xf]
    %v825 = vld [vmem:[#allocation9 + $0x9c] sm:$0xff]
    %v826 = vld [vmem:[#allocation9 + $0xa4] sm:$0xf]
    %v827 = vld [vmem:[#allocation9 + $0xa8] sm:$0xff]
    %v828 = vld [vmem:[#allocation9 + $0xb0] sm:$0xf]
    %v829 = vld [vmem:[#allocation9 + $0xb4] sm:$0xff]
    %v830 = vld [vmem:[#allocation9 + $0xbc] sm:$0xf]
    %v863 = vunpack.c.l.b16 %v799
    %v864 = vunpack.c.h.b16 %v799
    %v865 = vunpack.c.l.b16 %v800
    %v866 = vunpack.c.l.b16 %v801
    %v867 = vunpack.c.h.b16 %v801
    %v868 = vunpack.c.l.b16 %v802
    %v869 = vunpack.c.l.b16 %v803
    %v870 = vunpack.c.h.b16 %v803
    %v871 = vunpack.c.l.b16 %v804
    %v872 = vunpack.c.l.b16 %v805
    %v873 = vunpack.c.h.b16 %v805
    %v874 = vunpack.c.l.b16 %v806
    %v875 = vunpack.c.l.b16 %v807
    %v876 = vunpack.c.h.b16 %v807
    %v877 = vunpack.c.l.b16 %v808
    %v878 = vunpack.c.l.b16 %v809
    %v879 = vunpack.c.h.b16 %v809
    %v880 = vunpack.c.l.b16 %v810
    %v881 = vunpack.c.l.b16 %v811
    %v882 = vunpack.c.h.b16 %v811
    %v883 = vunpack.c.l.b16 %v812
    %v884 = vunpack.c.l.b16 %v813
    %v885 = vunpack.c.h.b16 %v813
    %v886 = vunpack.c.l.b16 %v814
    %v887 = vunpack.c.l.b16 %v815
    %v888 = vunpack.c.h.b16 %v815
    %v889 = vunpack.c.l.b16 %v816
    %v890 = vunpack.c.l.b16 %v817
    %v891 = vunpack.c.h.b16 %v817
    %v892 = vunpack.c.l.b16 %v818
    %v893 = vunpack.c.l.b16 %v819
    %v894 = vunpack.c.h.b16 %v819
    %v895 = vunpack.c.l.b16 %v820
    %v896 = vunpack.c.l.b16 %v821
    %v897 = vunpack.c.h.b16 %v821
    %v898 = vunpack.c.l.b16 %v822
    %v899 = vunpack.c.l.b16 %v823
    %v900 = vunpack.c.h.b16 %v823
    %v901 = vunpack.c.l.b16 %v824
    %v902 = vunpack.c.l.b16 %v825
    %v903 = vunpack.c.h.b16 %v825
    %v904 = vunpack.c.l.b16 %v826
    %v905 = vunpack.c.l.b16 %v827
    %v906 = vunpack.c.h.b16 %v827
    %v907 = vunpack.c.l.b16 %v828
    %v908 = vunpack.c.l.b16 %v829
    %v909 = vunpack.c.h.b16 %v829
    %v910 = vunpack.c.l.b16 %v830
    %v911 = vpack.c.b16 %v866, %v863
    %v912 = vpack.c.b16 %v867, %v864
    %v913 = vpack.c.b16 %v868, %v865
    %v914 = vpack.c.b16 %v872, %v869
    %v915 = vpack.c.b16 %v873, %v870
    %v916 = vpack.c.b16 %v874, %v871
    %v917 = vpack.c.b16 %v878, %v875
    %v918 = vpack.c.b16 %v879, %v876
    %v919 = vpack.c.b16 %v880, %v877
    %v920 = vpack.c.b16 %v884, %v881
    %v921 = vpack.c.b16 %v885, %v882
    %v922 = vpack.c.b16 %v886, %v883
    %v923 = vpack.c.b16 %v890, %v887
    %v924 = vpack.c.b16 %v891, %v888
    %v925 = vpack.c.b16 %v892, %v889
    %v926 = vpack.c.b16 %v896, %v893
    %v927 = vpack.c.b16 %v897, %v894
    %v928 = vpack.c.b16 %v898, %v895
    %v929 = vpack.c.b16 %v902, %v899
    %v930 = vpack.c.b16 %v903, %v900
    %v931 = vpack.c.b16 %v904, %v901
    %v932 = vpack.c.b16 %v908, %v905
    %v933 = vpack.c.b16 %v909, %v906
    %v934 = vpack.c.b16 %v910, %v907
    %959 = vmatpush.bf16.msra.mxu0 %v932
    %960 = vmatpush.bf16.msra.mxu0 %v929
    %961 = vmatpush.bf16.msra.mxu0 %v926
    %962 = vmatpush.bf16.msra.mxu0 %v923
    %963 = vmatpush.bf16.msra.mxu0 %v920
    %964 = vmatpush.bf16.msra.mxu0 %v917
    %965 = vmatpush.bf16.msra.mxu0 %v914
    %966 = vmatpush.bf16.msra.mxu0 %v911
    %967 = vmatmul.bf16.gmra.mxu0 %v798
    %v968 = vpop.f32.mrf.mxu0
    %v969 = vadd.f32 0.0, %v968
    %v970 = vpop.f32.mrf.mxu0
    %971 = vdwg.mxu0
    %972 = vmatpush.bf16.msra.mxu0 %v933
    %973 = vmatpush.bf16.msra.mxu0 %v930
    %974 = vmatpush.bf16.msra.mxu0 %v927
    %975 = vmatpush.bf16.msra.mxu0 %v924
    %976 = vmatpush.bf16.msra.mxu0 %v921
    %977 = vmatpush.bf16.msra.mxu0 %v918
    %978 = vmatpush.bf16.msra.mxu0 %v915
    %979 = vmatpush.bf16.msra.mxu0 %v912
    %980 = vmatmul.bf16.gmra.mxu0 %v798
    %v981 = vpop.f32.mrf.mxu0
    %v982 = vadd.f32 0.0, %v981
    %v983 = vpop.f32.mrf.mxu0
    %984 = vdwg.mxu0
    %985 = vmatpush.bf16.msra.mxu0 %v934
    %986 = vmatpush.bf16.msra.mxu0 %v931
    %987 = vmatpush.bf16.msra.mxu0 %v928
    %988 = vmatpush.bf16.msra.mxu0 %v925
    %989 = vmatpush.bf16.msra.mxu0 %v922
    %990 = vmatpush.bf16.msra.mxu0 %v919
    %991 = vmatpush.bf16.msra.mxu0 %v916
    %992 = vmatpush.bf16.msra.mxu0 %v913
    %993 = vmatmul.bf16.gmra.mxu0 %v798
    %v994 = vpop.f32.mrf.mxu0
    %v995 = vadd.f32 0.0, %v994
    %v996 = vpop.f32.mrf.mxu0
    %997 = vdwg.mxu0
    %v998 = vadd.f32 %v795, %v969
    %v999 = vxor.u32 %v998, 2147483648
    %v1000 = vmul.f32 %v999, 1.442695
    %v1001 = vpow.pop %v1000
    %v1002 = vadd.f32 %v1001, 1.0
    %v1003 = vrcp.pop %v1002
    %v1004 = vmul.f32 %v1002, %v1003
    %v1005 = vsub.f32 1.0, %v1004
    %v1006 = vmul.f32 %v1003, %v1005
    %v1007 = vadd.f32 %v1003, %v1006
    %vm1008 = vweird.f32 %v1002
    %vm1009 = vweird.f32 %v1003
    %vm1010 = vmor %vm1008, %vm1009
    %v1011 = vsel %vm1010, %v1003, %v1007
    %v1012 = vand.u32 2147483647, %v1002
    %vm1013 = vcmp.eq.f32.partialorder %v1012, 8.507059e+37
    %v1014 = vand.u32 %v1002, 2147483648
    %v1015 = vor.u32 1.1754944e-38, %v1014
    %v1016 = vsel %vm1013, %v1015, %v1011
    %v1017 = vmul.f32 1.0, %v1016
    %v1018 = vadd.f32 %v796, %v982
    %v1019 = vxor.u32 %v1018, 2147483648
    %v1020 = vmul.f32 %v1019, 1.442695
    %v1021 = vpow.pop %v1020
    %v1022 = vadd.f32 %v1021, 1.0
    %v1023 = vrcp.pop %v1022
    %v1024 = vmul.f32 %v1022, %v1023
    %v1025 = vsub.f32 1.0, %v1024
    %v1026 = vmul.f32 %v1023, %v1025
    %v1027 = vadd.f32 %v1023, %v1026
    %vm1028 = vweird.f32 %v1022
    %vm1029 = vweird.f32 %v1023
    %vm1030 = vmor %vm1028, %vm1029
    %v1031 = vsel %vm1030, %v1023, %v1027
    %v1032 = vand.u32 2147483647, %v1022
    %vm1033 = vcmp.eq.f32.partialorder %v1032, 8.507059e+37
    %v1034 = vand.u32 %v1022, 2147483648
    %v1035 = vor.u32 1.1754944e-38, %v1034
    %v1036 = vsel %vm1033, %v1035, %v1031
    %v1037 = vmul.f32 1.0, %v1036
    %v1038 = vadd.f32 %v995, %v512
    %v1039 = vmul.f32 %v1017, %v1038
    %v1040 = vadd.f32 %v797, %v1039
    %v1041 = vtanh.pop %v1040
    %v1042 = vsub.f32 1.0, %v1037
    %v1043 = vmul.f32 %v1042, %v1041
    %v1044 = vmul.f32 %v1037, %v791
    %v1045 = vadd.f32 %v1043, %v1044
    %s1046 = sadd.s32 %s266, 2
    %v1047 = vstv %s1046
    %vm1048 = vcmp.lt.s32.totalorder %v1047, %v265
    %v1049 = vsel %vm1048, 1, 0
    %1050 = vset.pattern.permute.xlu0 0
    %1051 = vperm.xlu0 %1050, %v1049
    %v1052 = vpop.permute.xlu0 %1051
    %vm1053 = vcmp.eq.s32.totalorder %v1052, 1
    %v1054 = vsel %vm1053, %v1045, %v791
    %v1055 = vsel %vm1053, %v1045, 0.0
    %s1056 = scalar_lea.vmem [#allocation10], 16
    %1057 = vst [vmem:[%s1056] sm:$0xff] %v1055
    %v1058 = vld [vmem:[#allocation2 + $0x48] sm:$0xff]
    %v1059 = vld [vmem:[#allocation2 + $0x50] sm:$0xff]
    %v1060 = vld [vmem:[#allocation2 + $0x58] sm:$0xff]
    %v1061 = vpack.c.bf16 %v1054, %v1054
    %v1062 = vld [vmem:[#allocation9] sm:$0xff]
    %v1063 = vld [vmem:[#allocation9 + $0x8] sm:$0xf]
    %v1064 = vld [vmem:[#allocation9 + $0xc] sm:$0xff]
    %v1065 = vld [vmem:[#allocation9 + $0x14] sm:$0xf]
    %v1066 = vld [vmem:[#allocation9 + $0x18] sm:$0xff]
    %v1067 = vld [vmem:[#allocation9 + $0x20] sm:$0xf]
    %v1068 = vld [vmem:[#allocation9 + $0x24] sm:$0xff]
    %v1069 = vld [vmem:[#allocation9 + $0x2c] sm:$0xf]
    %v1070 = vld [vmem:[#allocation9 + $0x30] sm:$0xff]
    %v1071 = vld [vmem:[#allocation9 + $0x38] sm:$0xf]
    %v1072 = vld [vmem:[#allocation9 + $0x3c] sm:$0xff]
    %v1073 = vld [vmem:[#allocation9 + $0x44] sm:$0xf]
    %v1074 = vld [vmem:[#allocation9 + $0x48] sm:$0xff]
    %v1075 = vld [vmem:[#allocation9 + $0x50] sm:$0xf]
    %v1076 = vld [vmem:[#allocation9 + $0x54] sm:$0xff]
    %v1077 = vld [vmem:[#allocation9 + $0x5c] sm:$0xf]
    %v1078 = vld [vmem:[#allocation9 + $0x60] sm:$0xff]
    %v1079 = vld [vmem:[#allocation9 + $0x68] sm:$0xf]
    %v1080 = vld [vmem:[#allocation9 + $0x6c] sm:$0xff]
    %v1081 = vld [vmem:[#allocation9 + $0x74] sm:$0xf]
    %v1082 = vld [vmem:[#allocation9 + $0x78] sm:$0xff]
    %v1083 = vld [vmem:[#allocation9 + $0x80] sm:$0xf]
    %v1084 = vld [vmem:[#allocation9 + $0x84] sm:$0xff]
    %v1085 = vld [vmem:[#allocation9 + $0x8c] sm:$0xf]
    %v1086 = vld [vmem:[#allocation9 + $0x90] sm:$0xff]
    %v1087 = vld [vmem:[#allocation9 + $0x98] sm:$0xf]
    %v1088 = vld [vmem:[#allocation9 + $0x9c] sm:$0xff]
    %v1089 = vld [vmem:[#allocation9 + $0xa4] sm:$0xf]
    %v1090 = vld [vmem:[#allocation9 + $0xa8] sm:$0xff]
    %v1091 = vld [vmem:[#allocation9 + $0xb0] sm:$0xf]
    %v1092 = vld [vmem:[#allocation9 + $0xb4] sm:$0xff]
    %v1093 = vld [vmem:[#allocation9 + $0xbc] sm:$0xf]
    %v1126 = vunpack.c.l.b16 %v1062
    %v1127 = vunpack.c.h.b16 %v1062
    %v1128 = vunpack.c.l.b16 %v1063
    %v1129 = vunpack.c.l.b16 %v1064
    %v1130 = vunpack.c.h.b16 %v1064
    %v1131 = vunpack.c.l.b16 %v1065
    %v1132 = vunpack.c.l.b16 %v1066
    %v1133 = vunpack.c.h.b16 %v1066
    %v1134 = vunpack.c.l.b16 %v1067
    %v1135 = vunpack.c.l.b16 %v1068
    %v1136 = vunpack.c.h.b16 %v1068
    %v1137 = vunpack.c.l.b16 %v1069
    %v1138 = vunpack.c.l.b16 %v1070
    %v1139 = vunpack.c.h.b16 %v1070
    %v1140 = vunpack.c.l.b16 %v1071
    %v1141 = vunpack.c.l.b16 %v1072
    %v1142 = vunpack.c.h.b16 %v1072
    %v1143 = vunpack.c.l.b16 %v1073
    %v1144 = vunpack.c.l.b16 %v1074
    %v1145 = vunpack.c.h.b16 %v1074
    %v1146 = vunpack.c.l.b16 %v1075
    %v1147 = vunpack.c.l.b16 %v1076
    %v1148 = vunpack.c.h.b16 %v1076
    %v1149 = vunpack.c.l.b16 %v1077
    %v1150 = vunpack.c.l.b16 %v1078
    %v1151 = vunpack.c.h.b16 %v1078
    %v1152 = vunpack.c.l.b16 %v1079
    %v1153 = vunpack.c.l.b16 %v1080
    %v1154 = vunpack.c.h.b16 %v1080
    %v1155 = vunpack.c.l.b16 %v1081
    %v1156 = vunpack.c.l.b16 %v1082
    %v1157 = vunpack.c.h.b16 %v1082
    %v1158 = vunpack.c.l.b16 %v1083
    %v1159 = vunpack.c.l.b16 %v1084
    %v1160 = vunpack.c.h.b16 %v1084
    %v1161 = vunpack.c.l.b16 %v1085
    %v1162 = vunpack.c.l.b16 %v1086
    %v1163 = vunpack.c.h.b16 %v1086
    %v1164 = vunpack.c.l.b16 %v1087
    %v1165 = vunpack.c.l.b16 %v1088
    %v1166 = vunpack.c.h.b16 %v1088
    %v1167 = vunpack.c.l.b16 %v1089
    %v1168 = vunpack.c.l.b16 %v1090
    %v1169 = vunpack.c.h.b16 %v1090
    %v1170 = vunpack.c.l.b16 %v1091
    %v1171 = vunpack.c.l.b16 %v1092
    %v1172 = vunpack.c.h.b16 %v1092
    %v1173 = vunpack.c.l.b16 %v1093
    %v1174 = vpack.c.b16 %v1129, %v1126
    %v1175 = vpack.c.b16 %v1130, %v1127
    %v1176 = vpack.c.b16 %v1131, %v1128
    %v1177 = vpack.c.b16 %v1135, %v1132
    %v1178 = vpack.c.b16 %v1136, %v1133
    %v1179 = vpack.c.b16 %v1137, %v1134
    %v1180 = vpack.c.b16 %v1141, %v1138
    %v1181 = vpack.c.b16 %v1142, %v1139
    %v1182 = vpack.c.b16 %v1143, %v1140
    %v1183 = vpack.c.b16 %v1147, %v1144
    %v1184 = vpack.c.b16 %v1148, %v1145
    %v1185 = vpack.c.b16 %v1149, %v1146
    %v1186 = vpack.c.b16 %v1153, %v1150
    %v1187 = vpack.c.b16 %v1154, %v1151
    %v1188 = vpack.c.b16 %v1155, %v1152
    %v1189 = vpack.c.b16 %v1159, %v1156
    %v1190 = vpack.c.b16 %v1160, %v1157
    %v1191 = vpack.c.b16 %v1161, %v1158
    %v1192 = vpack.c.b16 %v1165, %v1162
    %v1193 = vpack.c.b16 %v1166, %v1163
    %v1194 = vpack.c.b16 %v1167, %v1164
    %v1195 = vpack.c.b16 %v1171, %v1168
    %v1196 = vpack.c.b16 %v1172, %v1169
    %v1197 = vpack.c.b16 %v1173, %v1170
    %1222 = vmatpush.bf16.msra.mxu0 %v1195
    %1223 = vmatpush.bf16.msra.mxu0 %v1192
    %1224 = vmatpush.bf16.msra.mxu0 %v1189
    %1225 = vmatpush.bf16.msra.mxu0 %v1186
    %1226 = vmatpush.bf16.msra.mxu0 %v1183
    %1227 = vmatpush.bf16.msra.mxu0 %v1180
    %1228 = vmatpush.bf16.msra.mxu0 %v1177
    %1229 = vmatpush.bf16.msra.mxu0 %v1174
    %1230 = vmatmul.bf16.gmra.mxu0 %v1061
    %v1231 = vpop.f32.mrf.mxu0
    %v1232 = vadd.f32 0.0, %v1231
    %v1233 = vpop.f32.mrf.mxu0
    %1234 = vdwg.mxu0
    %1235 = vmatpush.bf16.msra.mxu0 %v1196
    %1236 = vmatpush.bf16.msra.mxu0 %v1193
    %1237 = vmatpush.bf16.msra.mxu0 %v1190
    %1238 = vmatpush.bf16.msra.mxu0 %v1187
    %1239 = vmatpush.bf16.msra.mxu0 %v1184
    %1240 = vmatpush.bf16.msra.mxu0 %v1181
    %1241 = vmatpush.bf16.msra.mxu0 %v1178
    %1242 = vmatpush.bf16.msra.mxu0 %v1175
    %1243 = vmatmul.bf16.gmra.mxu0 %v1061
    %v1244 = vpop.f32.mrf.mxu0
    %v1245 = vadd.f32 0.0, %v1244
    %v1246 = vpop.f32.mrf.mxu0
    %1247 = vdwg.mxu0
    %1248 = vmatpush.bf16.msra.mxu0 %v1197
    %1249 = vmatpush.bf16.msra.mxu0 %v1194
    %1250 = vmatpush.bf16.msra.mxu0 %v1191
    %1251 = vmatpush.bf16.msra.mxu0 %v1188
    %1252 = vmatpush.bf16.msra.mxu0 %v1185
    %1253 = vmatpush.bf16.msra.mxu0 %v1182
    %1254 = vmatpush.bf16.msra.mxu0 %v1179
    %1255 = vmatpush.bf16.msra.mxu0 %v1176
    %1256 = vmatmul.bf16.gmra.mxu0 %v1061
    %v1257 = vpop.f32.mrf.mxu0
    %v1258 = vadd.f32 0.0, %v1257
    %v1259 = vpop.f32.mrf.mxu0
    %1260 = vdwg.mxu0
    %v1261 = vadd.f32 %v1058, %v1232
    %v1262 = vxor.u32 %v1261, 2147483648
    %v1263 = vmul.f32 %v1262, 1.442695
    %v1264 = vpow.pop %v1263
    %v1265 = vadd.f32 %v1264, 1.0
    %v1266 = vrcp.pop %v1265
    %v1267 = vmul.f32 %v1265, %v1266
    %v1268 = vsub.f32 1.0, %v1267
    %v1269 = vmul.f32 %v1266, %v1268
    %v1270 = vadd.f32 %v1266, %v1269
    %vm1271 = vweird.f32 %v1265
    %vm1272 = vweird.f32 %v1266
    %vm1273 = vmor %vm1271, %vm1272
    %v1274 = vsel %vm1273, %v1266, %v1270
    %v1275 = vand.u32 2147483647, %v1265
    %vm1276 = vcmp.eq.f32.partialorder %v1275, 8.507059e+37
    %v1277 = vand.u32 %v1265, 2147483648
    %v1278 = vor.u32 1.1754944e-38, %v1277
    %v1279 = vsel %vm1276, %v1278, %v1274
    %v1280 = vmul.f32 1.0, %v1279
    %v1281 = vadd.f32 %v1059, %v1245
    %v1282 = vxor.u32 %v1281, 2147483648
    %v1283 = vmul.f32 %v1282, 1.442695
    %v1284 = vpow.pop %v1283
    %v1285 = vadd.f32 %v1284, 1.0
    %v1286 = vrcp.pop %v1285
    %v1287 = vmul.f32 %v1285, %v1286
    %v1288 = vsub.f32 1.0, %v1287
    %v1289 = vmul.f32 %v1286, %v1288
    %v1290 = vadd.f32 %v1286, %v1289
    %vm1291 = vweird.f32 %v1285
    %vm1292 = vweird.f32 %v1286
    %vm1293 = vmor %vm1291, %vm1292
    %v1294 = vsel %vm1293, %v1286, %v1290
    %v1295 = vand.u32 2147483647, %v1285
    %vm1296 = vcmp.eq.f32.partialorder %v1295, 8.507059e+37
    %v1297 = vand.u32 %v1285, 2147483648
    %v1298 = vor.u32 1.1754944e-38, %v1297
    %v1299 = vsel %vm1296, %v1298, %v1294
    %v1300 = vmul.f32 1.0, %v1299
    %v1301 = vadd.f32 %v1258, %v512
    %v1302 = vmul.f32 %v1280, %v1301
    %v1303 = vadd.f32 %v1060, %v1302
    %v1304 = vtanh.pop %v1303
    %v1305 = vsub.f32 1.0, %v1300
    %v1306 = vmul.f32 %v1305, %v1304
    %v1307 = vmul.f32 %v1300, %v1054
    %v1308 = vadd.f32 %v1306, %v1307
    %s1309 = sadd.s32 %s266, 3
    %v1310 = vstv %s1309
    %vm1311 = vcmp.lt.s32.totalorder %v1310, %v265
    %v1312 = vsel %vm1311, 1, 0
    %1313 = vset.pattern.permute.xlu0 0
    %1314 = vperm.xlu0 %1313, %v1312
    %v1315 = vpop.permute.xlu0 %1314
    %vm1316 = vcmp.eq.s32.totalorder %v1315, 1
    %v1317 = vsel %vm1316, %v1308, %v1054
    %v1318 = vsel %vm1316, %v1308, 0.0
    %s1319 = scalar_lea.vmem [#allocation10], 24
    %1320 = vst [vmem:[%s1319] sm:$0xff] %v1318
    %v1321 = vld [vmem:[#allocation2 + $0x60] sm:$0xff]
    %v1322 = vld [vmem:[#allocation2 + $0x68] sm:$0xff]
    %v1323 = vld [vmem:[#allocation2 + $0x70] sm:$0xff]
    %v1324 = vpack.c.bf16 %v1317, %v1317
    %v1325 = vld [vmem:[#allocation9] sm:$0xff]
    %v1326 = vld [vmem:[#allocation9 + $0x8] sm:$0xf]
    %v1327 = vld [vmem:[#allocation9 + $0xc] sm:$0xff]
    %v1328 = vld [vmem:[#allocation9 + $0x14] sm:$0xf]
    %v1329 = vld [vmem:[#allocation9 + $0x18] sm:$0xff]
    %v1330 = vld [vmem:[#allocation9 + $0x20] sm:$0xf]
    %v1331 = vld [vmem:[#allocation9 + $0x24] sm:$0xff]
    %v1332 = vld [vmem:[#allocation9 + $0x2c] sm:$0xf]
    %v1333 = vld [vmem:[#allocation9 + $0x30] sm:$0xff]
    %v1334 = vld [vmem:[#allocation9 + $0x38] sm:$0xf]
    %v1335 = vld [vmem:[#allocation9 + $0x3c] sm:$0xff]
    %v1336 = vld [vmem:[#allocation9 + $0x44] sm:$0xf]
    %v1337 = vld [vmem:[#allocation9 + $0x48] sm:$0xff]
    %v1338 = vld [vmem:[#allocation9 + $0x50] sm:$0xf]
    %v1339 = vld [vmem:[#allocation9 + $0x54] sm:$0xff]
    %v1340 = vld [vmem:[#allocation9 + $0x5c] sm:$0xf]
    %v1341 = vld [vmem:[#allocation9 + $0x60] sm:$0xff]
    %v1342 = vld [vmem:[#allocation9 + $0x68] sm:$0xf]
    %v1343 = vld [vmem:[#allocation9 + $0x6c] sm:$0xff]
    %v1344 = vld [vmem:[#allocation9 + $0x74] sm:$0xf]
    %v1345 = vld [vmem:[#allocation9 + $0x78] sm:$0xff]
    %v1346 = vld [vmem:[#allocation9 + $0x80] sm:$0xf]
    %v1347 = vld [vmem:[#allocation9 + $0x84] sm:$0xff]
    %v1348 = vld [vmem:[#allocation9 + $0x8c] sm:$0xf]
    %v1349 = vld [vmem:[#allocation9 + $0x90] sm:$0xff]
    %v1350 = vld [vmem:[#allocation9 + $0x98] sm:$0xf]
    %v1351 = vld [vmem:[#allocation9 + $0x9c] sm:$0xff]
    %v1352 = vld [vmem:[#allocation9 + $0xa4] sm:$0xf]
    %v1353 = vld [vmem:[#allocation9 + $0xa8] sm:$0xff]
    %v1354 = vld [vmem:[#allocation9 + $0xb0] sm:$0xf]
    %v1355 = vld [vmem:[#allocation9 + $0xb4] sm:$0xff]
    %v1356 = vld [vmem:[#allocation9 + $0xbc] sm:$0xf]
    %v1389 = vunpack.c.l.b16 %v1325
    %v1390 = vunpack.c.h.b16 %v1325
    %v1391 = vunpack.c.l.b16 %v1326
    %v1392 = vunpack.c.l.b16 %v1327
    %v1393 = vunpack.c.h.b16 %v1327
    %v1394 = vunpack.c.l.b16 %v1328
    %v1395 = vunpack.c.l.b16 %v1329
    %v1396 = vunpack.c.h.b16 %v1329
    %v1397 = vunpack.c.l.b16 %v1330
    %v1398 = vunpack.c.l.b16 %v1331
    %v1399 = vunpack.c.h.b16 %v1331
    %v1400 = vunpack.c.l.b16 %v1332
    %v1401 = vunpack.c.l.b16 %v1333
    %v1402 = vunpack.c.h.b16 %v1333
    %v1403 = vunpack.c.l.b16 %v1334
    %v1404 = vunpack.c.l.b16 %v1335
    %v1405 = vunpack.c.h.b16 %v1335
    %v1406 = vunpack.c.l.b16 %v1336
    %v1407 = vunpack.c.l.b16 %v1337
    %v1408 = vunpack.c.h.b16 %v1337
    %v1409 = vunpack.c.l.b16 %v1338
    %v1410 = vunpack.c.l.b16 %v1339
    %v1411 = vunpack.c.h.b16 %v1339
    %v1412 = vunpack.c.l.b16 %v1340
    %v1413 = vunpack.c.l.b16 %v1341
    %v1414 = vunpack.c.h.b16 %v1341
    %v1415 = vunpack.c.l.b16 %v1342
    %v1416 = vunpack.c.l.b16 %v1343
    %v1417 = vunpack.c.h.b16 %v1343
    %v1418 = vunpack.c.l.b16 %v1344
    %v1419 = vunpack.c.l.b16 %v1345
    %v1420 = vunpack.c.h.b16 %v1345
    %v1421 = vunpack.c.l.b16 %v1346
    %v1422 = vunpack.c.l.b16 %v1347
    %v1423 = vunpack.c.h.b16 %v1347
    %v1424 = vunpack.c.l.b16 %v1348
    %v1425 = vunpack.c.l.b16 %v1349
    %v1426 = vunpack.c.h.b16 %v1349
    %v1427 = vunpack.c.l.b16 %v1350
    %v1428 = vunpack.c.l.b16 %v1351
    %v1429 = vunpack.c.h.b16 %v1351
    %v1430 = vunpack.c.l.b16 %v1352
    %v1431 = vunpack.c.l.b16 %v1353
    %v1432 = vunpack.c.h.b16 %v1353
    %v1433 = vunpack.c.l.b16 %v1354
    %v1434 = vunpack.c.l.b16 %v1355
    %v1435 = vunpack.c.h.b16 %v1355
    %v1436 = vunpack.c.l.b16 %v1356
    %v1437 = vpack.c.b16 %v1392, %v1389
    %v1438 = vpack.c.b16 %v1393, %v1390
    %v1439 = vpack.c.b16 %v1394, %v1391
    %v1440 = vpack.c.b16 %v1398, %v1395
    %v1441 = vpack.c.b16 %v1399, %v1396
    %v1442 = vpack.c.b16 %v1400, %v1397
    %v1443 = vpack.c.b16 %v1404, %v1401
    %v1444 = vpack.c.b16 %v1405, %v1402
    %v1445 = vpack.c.b16 %v1406, %v1403
    %v1446 = vpack.c.b16 %v1410, %v1407
    %v1447 = vpack.c.b16 %v1411, %v1408
    %v1448 = vpack.c.b16 %v1412, %v1409
    %v1449 = vpack.c.b16 %v1416, %v1413
    %v1450 = vpack.c.b16 %v1417, %v1414
    %v1451 = vpack.c.b16 %v1418, %v1415
    %v1452 = vpack.c.b16 %v1422, %v1419
    %v1453 = vpack.c.b16 %v1423, %v1420
    %v1454 = vpack.c.b16 %v1424, %v1421
    %v1455 = vpack.c.b16 %v1428, %v1425
    %v1456 = vpack.c.b16 %v1429, %v1426
    %v1457 = vpack.c.b16 %v1430, %v1427
    %v1458 = vpack.c.b16 %v1434, %v1431
    %v1459 = vpack.c.b16 %v1435, %v1432
    %v1460 = vpack.c.b16 %v1436, %v1433
    %1485 = vmatpush.bf16.msra.mxu0 %v1458
    %1486 = vmatpush.bf16.msra.mxu0 %v1455
    %1487 = vmatpush.bf16.msra.mxu0 %v1452
    %1488 = vmatpush.bf16.msra.mxu0 %v1449
    %1489 = vmatpush.bf16.msra.mxu0 %v1446
    %1490 = vmatpush.bf16.msra.mxu0 %v1443
    %1491 = vmatpush.bf16.msra.mxu0 %v1440
    %1492 = vmatpush.bf16.msra.mxu0 %v1437
    %1493 = vmatmul.bf16.gmra.mxu0 %v1324
    %v1494 = vpop.f32.mrf.mxu0
    %v1495 = vadd.f32 0.0, %v1494
    %v1496 = vpop.f32.mrf.mxu0
    %1497 = vdwg.mxu0
    %1498 = vmatpush.bf16.msra.mxu0 %v1459
    %1499 = vmatpush.bf16.msra.mxu0 %v1456
    %1500 = vmatpush.bf16.msra.mxu0 %v1453
    %1501 = vmatpush.bf16.msra.mxu0 %v1450
    %1502 = vmatpush.bf16.msra.mxu0 %v1447
    %1503 = vmatpush.bf16.msra.mxu0 %v1444
    %1504 = vmatpush.bf16.msra.mxu0 %v1441
    %1505 = vmatpush.bf16.msra.mxu0 %v1438
    %1506 = vmatmul.bf16.gmra.mxu0 %v1324
    %v1507 = vpop.f32.mrf.mxu0
    %v1508 = vadd.f32 0.0, %v1507
    %v1509 = vpop.f32.mrf.mxu0
    %1510 = vdwg.mxu0
    %1511 = vmatpush.bf16.msra.mxu0 %v1460
    %1512 = vmatpush.bf16.msra.mxu0 %v1457
    %1513 = vmatpush.bf16.msra.mxu0 %v1454
    %1514 = vmatpush.bf16.msra.mxu0 %v1451
    %1515 = vmatpush.bf16.msra.mxu0 %v1448
    %1516 = vmatpush.bf16.msra.mxu0 %v1445
    %1517 = vmatpush.bf16.msra.mxu0 %v1442
    %1518 = vmatpush.bf16.msra.mxu0 %v1439
    %1519 = vmatmul.bf16.gmra.mxu0 %v1324
    %v1520 = vpop.f32.mrf.mxu0
    %v1521 = vadd.f32 0.0, %v1520
    %v1522 = vpop.f32.mrf.mxu0
    %1523 = vdwg.mxu0
    %v1524 = vadd.f32 %v1321, %v1495
    %v1525 = vxor.u32 %v1524, 2147483648
    %v1526 = vmul.f32 %v1525, 1.442695
    %v1527 = vpow.pop %v1526
    %v1528 = vadd.f32 %v1527, 1.0
    %v1529 = vrcp.pop %v1528
    %v1530 = vmul.f32 %v1528, %v1529
    %v1531 = vsub.f32 1.0, %v1530
    %v1532 = vmul.f32 %v1529, %v1531
    %v1533 = vadd.f32 %v1529, %v1532
    %vm1534 = vweird.f32 %v1528
    %vm1535 = vweird.f32 %v1529
    %vm1536 = vmor %vm1534, %vm1535
    %v1537 = vsel %vm1536, %v1529, %v1533
    %v1538 = vand.u32 2147483647, %v1528
    %vm1539 = vcmp.eq.f32.partialorder %v1538, 8.507059e+37
    %v1540 = vand.u32 %v1528, 2147483648
    %v1541 = vor.u32 1.1754944e-38, %v1540
    %v1542 = vsel %vm1539, %v1541, %v1537
    %v1543 = vmul.f32 1.0, %v1542
    %v1544 = vadd.f32 %v1322, %v1508
    %v1545 = vxor.u32 %v1544, 2147483648
    %v1546 = vmul.f32 %v1545, 1.442695
    %v1547 = vpow.pop %v1546
    %v1548 = vadd.f32 %v1547, 1.0
    %v1549 = vrcp.pop %v1548
    %v1550 = vmul.f32 %v1548, %v1549
    %v1551 = vsub.f32 1.0, %v1550
    %v1552 = vmul.f32 %v1549, %v1551
    %v1553 = vadd.f32 %v1549, %v1552
    %vm1554 = vweird.f32 %v1548
    %vm1555 = vweird.f32 %v1549
    %vm1556 = vmor %vm1554, %vm1555
    %v1557 = vsel %vm1556, %v1549, %v1553
    %v1558 = vand.u32 2147483647, %v1548
    %vm1559 = vcmp.eq.f32.partialorder %v1558, 8.507059e+37
    %v1560 = vand.u32 %v1548, 2147483648
    %v1561 = vor.u32 1.1754944e-38, %v1560
    %v1562 = vsel %vm1559, %v1561, %v1557
    %v1563 = vmul.f32 1.0, %v1562
    %v1564 = vadd.f32 %v1521, %v512
    %v1565 = vmul.f32 %v1543, %v1564
    %v1566 = vadd.f32 %v1323, %v1565
    %v1567 = vtanh.pop %v1566
    %v1568 = vsub.f32 1.0, %v1563
    %v1569 = vmul.f32 %v1568, %v1567
    %v1570 = vmul.f32 %v1563, %v1317
    %v1571 = vadd.f32 %v1569, %v1570
    %s1572 = sadd.s32 %s266, 4
    %v1573 = vstv %s1572
    %vm1574 = vcmp.lt.s32.totalorder %v1573, %v265
    %v1575 = vsel %vm1574, 1, 0
    %1576 = vset.pattern.permute.xlu0 0
    %1577 = vperm.xlu0 %1576, %v1575
    %v1578 = vpop.permute.xlu0 %1577
    %vm1579 = vcmp.eq.s32.totalorder %v1578, 1
    %v1580 = vsel %vm1579, %v1571, %v1317
    %v1581 = vsel %vm1579, %v1571, 0.0
    %s1582 = scalar_lea.vmem [#allocation10], 32
    %1583 = vst [vmem:[%s1582] sm:$0xff] %v1581
    %v1584 = vld [vmem:[#allocation2 + $0x78] sm:$0xff]
    %v1585 = vld [vmem:[#allocation2 + $0x80] sm:$0xff]
    %v1586 = vld [vmem:[#allocation2 + $0x88] sm:$0xff]
    %v1587 = vpack.c.bf16 %v1580, %v1580
    %v1588 = vld [vmem:[#allocation9] sm:$0xff]
    %v1589 = vld [vmem:[#allocation9 + $0x8] sm:$0xf]
    %v1590 = vld [vmem:[#allocation9 + $0xc] sm:$0xff]
    %v1591 = vld [vmem:[#allocation9 + $0x14] sm:$0xf]
    %v1592 = vld [vmem:[#allocation9 + $0x18] sm:$0xff]
    %v1593 = vld [vmem:[#allocation9 + $0x20] sm:$0xf]
    %v1594 = vld [vmem:[#allocation9 + $0x24] sm:$0xff]
    %v1595 = vld [vmem:[#allocation9 + $0x2c] sm:$0xf]
    %v1596 = vld [vmem:[#allocation9 + $0x30] sm:$0xff]
    %v1597 = vld [vmem:[#allocation9 + $0x38] sm:$0xf]
    %v1598 = vld [vmem:[#allocation9 + $0x3c] sm:$0xff]
    %v1599 = vld [vmem:[#allocation9 + $0x44] sm:$0xf]
    %v1600 = vld [vmem:[#allocation9 + $0x48] sm:$0xff]
    %v1601 = vld [vmem:[#allocation9 + $0x50] sm:$0xf]
    %v1602 = vld [vmem:[#allocation9 + $0x54] sm:$0xff]
    %v1603 = vld [vmem:[#allocation9 + $0x5c] sm:$0xf]
    %v1604 = vld [vmem:[#allocation9 + $0x60] sm:$0xff]
    %v1605 = vld [vmem:[#allocation9 + $0x68] sm:$0xf]
    %v1606 = vld [vmem:[#allocation9 + $0x6c] sm:$0xff]
    %v1607 = vld [vmem:[#allocation9 + $0x74] sm:$0xf]
    %v1608 = vld [vmem:[#allocation9 + $0x78] sm:$0xff]
    %v1609 = vld [vmem:[#allocation9 + $0x80] sm:$0xf]
    %v1610 = vld [vmem:[#allocation9 + $0x84] sm:$0xff]
    %v1611 = vld [vmem:[#allocation9 + $0x8c] sm:$0xf]
    %v1612 = vld [vmem:[#allocation9 + $0x90] sm:$0xff]
    %v1613 = vld [vmem:[#allocation9 + $0x98] sm:$0xf]
    %v1614 = vld [vmem:[#allocation9 + $0x9c] sm:$0xff]
    %v1615 = vld [vmem:[#allocation9 + $0xa4] sm:$0xf]
    %v1616 = vld [vmem:[#allocation9 + $0xa8] sm:$0xff]
    %v1617 = vld [vmem:[#allocation9 + $0xb0] sm:$0xf]
    %v1618 = vld [vmem:[#allocation9 + $0xb4] sm:$0xff]
    %v1619 = vld [vmem:[#allocation9 + $0xbc] sm:$0xf]
    %v1652 = vunpack.c.l.b16 %v1588
    %v1653 = vunpack.c.h.b16 %v1588
    %v1654 = vunpack.c.l.b16 %v1589
    %v1655 = vunpack.c.l.b16 %v1590
    %v1656 = vunpack.c.h.b16 %v1590
    %v1657 = vunpack.c.l.b16 %v1591
    %v1658 = vunpack.c.l.b16 %v1592
    %v1659 = vunpack.c.h.b16 %v1592
    %v1660 = vunpack.c.l.b16 %v1593
    %v1661 = vunpack.c.l.b16 %v1594
    %v1662 = vunpack.c.h.b16 %v1594
    %v1663 = vunpack.c.l.b16 %v1595
    %v1664 = vunpack.c.l.b16 %v1596
    %v1665 = vunpack.c.h.b16 %v1596
    %v1666 = vunpack.c.l.b16 %v1597
    %v1667 = vunpack.c.l.b16 %v1598
    %v1668 = vunpack.c.h.b16 %v1598
    %v1669 = vunpack.c.l.b16 %v1599
    %v1670 = vunpack.c.l.b16 %v1600
    %v1671 = vunpack.c.h.b16 %v1600
    %v1672 = vunpack.c.l.b16 %v1601
    %v1673 = vunpack.c.l.b16 %v1602
    %v1674 = vunpack.c.h.b16 %v1602
    %v1675 = vunpack.c.l.b16 %v1603
    %v1676 = vunpack.c.l.b16 %v1604
    %v1677 = vunpack.c.h.b16 %v1604
    %v1678 = vunpack.c.l.b16 %v1605
    %v1679 = vunpack.c.l.b16 %v1606
    %v1680 = vunpack.c.h.b16 %v1606
    %v1681 = vunpack.c.l.b16 %v1607
    %v1682 = vunpack.c.l.b16 %v1608
    %v1683 = vunpack.c.h.b16 %v1608
    %v1684 = vunpack.c.l.b16 %v1609
    %v1685 = vunpack.c.l.b16 %v1610
    %v1686 = vunpack.c.h.b16 %v1610
    %v1687 = vunpack.c.l.b16 %v1611
    %v1688 = vunpack.c.l.b16 %v1612
    %v1689 = vunpack.c.h.b16 %v1612
    %v1690 = vunpack.c.l.b16 %v1613
    %v1691 = vunpack.c.l.b16 %v1614
    %v1692 = vunpack.c.h.b16 %v1614
    %v1693 = vunpack.c.l.b16 %v1615
    %v1694 = vunpack.c.l.b16 %v1616
    %v1695 = vunpack.c.h.b16 %v1616
    %v1696 = vunpack.c.l.b16 %v1617
    %v1697 = vunpack.c.l.b16 %v1618
    %v1698 = vunpack.c.h.b16 %v1618
    %v1699 = vunpack.c.l.b16 %v1619
    %v1700 = vpack.c.b16 %v1655, %v1652
    %v1701 = vpack.c.b16 %v1656, %v1653
    %v1702 = vpack.c.b16 %v1657, %v1654
    %v1703 = vpack.c.b16 %v1661, %v1658
    %v1704 = vpack.c.b16 %v1662, %v1659
    %v1705 = vpack.c.b16 %v1663, %v1660
    %v1706 = vpack.c.b16 %v1667, %v1664
    %v1707 = vpack.c.b16 %v1668, %v1665
    %v1708 = vpack.c.b16 %v1669, %v1666
    %v1709 = vpack.c.b16 %v1673, %v1670
    %v1710 = vpack.c.b16 %v1674, %v1671
    %v1711 = vpack.c.b16 %v1675, %v1672
    %v1712 = vpack.c.b16 %v1679, %v1676
    %v1713 = vpack.c.b16 %v1680, %v1677
    %v1714 = vpack.c.b16 %v1681, %v1678
    %v1715 = vpack.c.b16 %v1685, %v1682
    %v1716 = vpack.c.b16 %v1686, %v1683
    %v1717 = vpack.c.b16 %v1687, %v1684
    %v1718 = vpack.c.b16 %v1691, %v1688
    %v1719 = vpack.c.b16 %v1692, %v1689
    %v1720 = vpack.c.b16 %v1693, %v1690
    %v1721 = vpack.c.b16 %v1697, %v1694
    %v1722 = vpack.c.b16 %v1698, %v1695
    %v1723 = vpack.c.b16 %v1699, %v1696
    %1748 = vmatpush.bf16.msra.mxu0 %v1721
    %1749 = vmatpush.bf16.msra.mxu0 %v1718
    %1750 = vmatpush.bf16.msra.mxu0 %v1715
    %1751 = vmatpush.bf16.msra.mxu0 %v1712
    %1752 = vmatpush.bf16.msra.mxu0 %v1709
    %1753 = vmatpush.bf16.msra.mxu0 %v1706
    %1754 = vmatpush.bf16.msra.mxu0 %v1703
    %1755 = vmatpush.bf16.msra.mxu0 %v1700
    %1756 = vmatmul.bf16.gmra.mxu0 %v1587
    %v1757 = vpop.f32.mrf.mxu0
    %v1758 = vadd.f32 0.0, %v1757
    %v1759 = vpop.f32.mrf.mxu0
    %1760 = vdwg.mxu0
    %1761 = vmatpush.bf16.msra.mxu0 %v1722
    %1762 = vmatpush.bf16.msra.mxu0 %v1719
    %1763 = vmatpush.bf16.msra.mxu0 %v1716
    %1764 = vmatpush.bf16.msra.mxu0 %v1713
    %1765 = vmatpush.bf16.msra.mxu0 %v1710
    %1766 = vmatpush.bf16.msra.mxu0 %v1707
    %1767 = vmatpush.bf16.msra.mxu0 %v1704
    %1768 = vmatpush.bf16.msra.mxu0 %v1701
    %1769 = vmatmul.bf16.gmra.mxu0 %v1587
    %v1770 = vpop.f32.mrf.mxu0
    %v1771 = vadd.f32 0.0, %v1770
    %v1772 = vpop.f32.mrf.mxu0
    %1773 = vdwg.mxu0
    %1774 = vmatpush.bf16.msra.mxu0 %v1723
    %1775 = vmatpush.bf16.msra.mxu0 %v1720
    %1776 = vmatpush.bf16.msra.mxu0 %v1717
    %1777 = vmatpush.bf16.msra.mxu0 %v1714
    %1778 = vmatpush.bf16.msra.mxu0 %v1711
    %1779 = vmatpush.bf16.msra.mxu0 %v1708
    %1780 = vmatpush.bf16.msra.mxu0 %v1705
    %1781 = vmatpush.bf16.msra.mxu0 %v1702
    %1782 = vmatmul.bf16.gmra.mxu0 %v1587
    %v1783 = vpop.f32.mrf.mxu0
    %v1784 = vadd.f32 0.0, %v1783
    %v1785 = vpop.f32.mrf.mxu0
    %1786 = vdwg.mxu0
    %v1787 = vadd.f32 %v1584, %v1758
    %v1788 = vxor.u32 %v1787, 2147483648
    %v1789 = vmul.f32 %v1788, 1.442695
    %v1790 = vpow.pop %v1789
    %v1791 = vadd.f32 %v1790, 1.0
    %v1792 = vrcp.pop %v1791
    %v1793 = vmul.f32 %v1791, %v1792
    %v1794 = vsub.f32 1.0, %v1793
    %v1795 = vmul.f32 %v1792, %v1794
    %v1796 = vadd.f32 %v1792, %v1795
    %vm1797 = vweird.f32 %v1791
    %vm1798 = vweird.f32 %v1792
    %vm1799 = vmor %vm1797, %vm1798
    %v1800 = vsel %vm1799, %v1792, %v1796
    %v1801 = vand.u32 2147483647, %v1791
    %vm1802 = vcmp.eq.f32.partialorder %v1801, 8.507059e+37
    %v1803 = vand.u32 %v1791, 2147483648
    %v1804 = vor.u32 1.1754944e-38, %v1803
    %v1805 = vsel %vm1802, %v1804, %v1800
    %v1806 = vmul.f32 1.0, %v1805
    %v1807 = vadd.f32 %v1585, %v1771
    %v1808 = vxor.u32 %v1807, 2147483648
    %v1809 = vmul.f32 %v1808, 1.442695
    %v1810 = vpow.pop %v1809
    %v1811 = vadd.f32 %v1810, 1.0
    %v1812 = vrcp.pop %v1811
    %v1813 = vmul.f32 %v1811, %v1812
    %v1814 = vsub.f32 1.0, %v1813
    %v1815 = vmul.f32 %v1812, %v1814
    %v1816 = vadd.f32 %v1812, %v1815
    %vm1817 = vweird.f32 %v1811
    %vm1818 = vweird.f32 %v1812
    %vm1819 = vmor %vm1817, %vm1818
    %v1820 = vsel %vm1819, %v1812, %v1816
    %v1821 = vand.u32 2147483647, %v1811
    %vm1822 = vcmp.eq.f32.partialorder %v1821, 8.507059e+37
    %v1823 = vand.u32 %v1811, 2147483648
    %v1824 = vor.u32 1.1754944e-38, %v1823
    %v1825 = vsel %vm1822, %v1824, %v1820
    %v1826 = vmul.f32 1.0, %v1825
    %v1827 = vadd.f32 %v1784, %v512
    %v1828 = vmul.f32 %v1806, %v1827
    %v1829 = vadd.f32 %v1586, %v1828
    %v1830 = vtanh.pop %v1829
    %v1831 = vsub.f32 1.0, %v1826
    %v1832 = vmul.f32 %v1831, %v1830
    %v1833 = vmul.f32 %v1826, %v1580
    %v1834 = vadd.f32 %v1832, %v1833
    %s1835 = sadd.s32 %s266, 5
    %v1836 = vstv %s1835
    %vm1837 = vcmp.lt.s32.totalorder %v1836, %v265
    %v1838 = vsel %vm1837, 1, 0
    %1839 = vset.pattern.permute.xlu0 0
    %1840 = vperm.xlu0 %1839, %v1838
    %v1841 = vpop.permute.xlu0 %1840
    %vm1842 = vcmp.eq.s32.totalorder %v1841, 1
    %v1843 = vsel %vm1842, %v1834, %v1580
    %v1844 = vsel %vm1842, %v1834, 0.0
    %s1845 = scalar_lea.vmem [#allocation10], 40
    %1846 = vst [vmem:[%s1845] sm:$0xff] %v1844
    %v1847 = vld [vmem:[#allocation2 + $0x90] sm:$0xff]
    %v1848 = vld [vmem:[#allocation2 + $0x98] sm:$0xff]
    %v1849 = vld [vmem:[#allocation2 + $0xa0] sm:$0xff]
    %v1850 = vpack.c.bf16 %v1843, %v1843
    %v1851 = vld [vmem:[#allocation9] sm:$0xff]
    %v1852 = vld [vmem:[#allocation9 + $0x8] sm:$0xf]
    %v1853 = vld [vmem:[#allocation9 + $0xc] sm:$0xff]
    %v1854 = vld [vmem:[#allocation9 + $0x14] sm:$0xf]
    %v1855 = vld [vmem:[#allocation9 + $0x18] sm:$0xff]
    %v1856 = vld [vmem:[#allocation9 + $0x20] sm:$0xf]
    %v1857 = vld [vmem:[#allocation9 + $0x24] sm:$0xff]
    %v1858 = vld [vmem:[#allocation9 + $0x2c] sm:$0xf]
    %v1859 = vld [vmem:[#allocation9 + $0x30] sm:$0xff]
    %v1860 = vld [vmem:[#allocation9 + $0x38] sm:$0xf]
    %v1861 = vld [vmem:[#allocation9 + $0x3c] sm:$0xff]
    %v1862 = vld [vmem:[#allocation9 + $0x44] sm:$0xf]
    %v1863 = vld [vmem:[#allocation9 + $0x48] sm:$0xff]
    %v1864 = vld [vmem:[#allocation9 + $0x50] sm:$0xf]
    %v1865 = vld [vmem:[#allocation9 + $0x54] sm:$0xff]
    %v1866 = vld [vmem:[#allocation9 + $0x5c] sm:$0xf]
    %v1867 = vld [vmem:[#allocation9 + $0x60] sm:$0xff]
    %v1868 = vld [vmem:[#allocation9 + $0x68] sm:$0xf]
    %v1869 = vld [vmem:[#allocation9 + $0x6c] sm:$0xff]
    %v1870 = vld [vmem:[#allocation9 + $0x74] sm:$0xf]
    %v1871 = vld [vmem:[#allocation9 + $0x78] sm:$0xff]
    %v1872 = vld [vmem:[#allocation9 + $0x80] sm:$0xf]
    %v1873 = vld [vmem:[#allocation9 + $0x84] sm:$0xff]
    %v1874 = vld [vmem:[#allocation9 + $0x8c] sm:$0xf]
    %v1875 = vld [vmem:[#allocation9 + $0x90] sm:$0xff]
    %v1876 = vld [vmem:[#allocation9 + $0x98] sm:$0xf]
    %v1877 = vld [vmem:[#allocation9 + $0x9c] sm:$0xff]
    %v1878 = vld [vmem:[#allocation9 + $0xa4] sm:$0xf]
    %v1879 = vld [vmem:[#allocation9 + $0xa8] sm:$0xff]
    %v1880 = vld [vmem:[#allocation9 + $0xb0] sm:$0xf]
    %v1881 = vld [vmem:[#allocation9 + $0xb4] sm:$0xff]
    %v1882 = vld [vmem:[#allocation9 + $0xbc] sm:$0xf]
    %v1915 = vunpack.c.l.b16 %v1851
    %v1916 = vunpack.c.h.b16 %v1851
    %v1917 = vunpack.c.l.b16 %v1852
    %v1918 = vunpack.c.l.b16 %v1853
    %v1919 = vunpack.c.h.b16 %v1853
    %v1920 = vunpack.c.l.b16 %v1854
    %v1921 = vunpack.c.l.b16 %v1855
    %v1922 = vunpack.c.h.b16 %v1855
    %v1923 = vunpack.c.l.b16 %v1856
    %v1924 = vunpack.c.l.b16 %v1857
    %v1925 = vunpack.c.h.b16 %v1857
    %v1926 = vunpack.c.l.b16 %v1858
    %v1927 = vunpack.c.l.b16 %v1859
    %v1928 = vunpack.c.h.b16 %v1859
    %v1929 = vunpack.c.l.b16 %v1860
    %v1930 = vunpack.c.l.b16 %v1861
    %v1931 = vunpack.c.h.b16 %v1861
    %v1932 = vunpack.c.l.b16 %v1862
    %v1933 = vunpack.c.l.b16 %v1863
    %v1934 = vunpack.c.h.b16 %v1863
    %v1935 = vunpack.c.l.b16 %v1864
    %v1936 = vunpack.c.l.b16 %v1865
    %v1937 = vunpack.c.h.b16 %v1865
    %v1938 = vunpack.c.l.b16 %v1866
    %v1939 = vunpack.c.l.b16 %v1867
    %v1940 = vunpack.c.h.b16 %v1867
    %v1941 = vunpack.c.l.b16 %v1868
    %v1942 = vunpack.c.l.b16 %v1869
    %v1943 = vunpack.c.h.b16 %v1869
    %v1944 = vunpack.c.l.b16 %v1870
    %v1945 = vunpack.c.l.b16 %v1871
    %v1946 = vunpack.c.h.b16 %v1871
    %v1947 = vunpack.c.l.b16 %v1872
    %v1948 = vunpack.c.l.b16 %v1873
    %v1949 = vunpack.c.h.b16 %v1873
    %v1950 = vunpack.c.l.b16 %v1874
    %v1951 = vunpack.c.l.b16 %v1875
    %v1952 = vunpack.c.h.b16 %v1875
    %v1953 = vunpack.c.l.b16 %v1876
    %v1954 = vunpack.c.l.b16 %v1877
    %v1955 = vunpack.c.h.b16 %v1877
    %v1956 = vunpack.c.l.b16 %v1878
    %v1957 = vunpack.c.l.b16 %v1879
    %v1958 = vunpack.c.h.b16 %v1879
    %v1959 = vunpack.c.l.b16 %v1880
    %v1960 = vunpack.c.l.b16 %v1881
    %v1961 = vunpack.c.h.b16 %v1881
    %v1962 = vunpack.c.l.b16 %v1882
    %v1963 = vpack.c.b16 %v1918, %v1915
    %v1964 = vpack.c.b16 %v1919, %v1916
    %v1965 = vpack.c.b16 %v1920, %v1917
    %v1966 = vpack.c.b16 %v1924, %v1921
    %v1967 = vpack.c.b16 %v1925, %v1922
    %v1968 = vpack.c.b16 %v1926, %v1923
    %v1969 = vpack.c.b16 %v1930, %v1927
    %v1970 = vpack.c.b16 %v1931, %v1928
    %v1971 = vpack.c.b16 %v1932, %v1929
    %v1972 = vpack.c.b16 %v1936, %v1933
    %v1973 = vpack.c.b16 %v1937, %v1934
    %v1974 = vpack.c.b16 %v1938, %v1935
    %v1975 = vpack.c.b16 %v1942, %v1939
    %v1976 = vpack.c.b16 %v1943, %v1940
    %v1977 = vpack.c.b16 %v1944, %v1941
    %v1978 = vpack.c.b16 %v1948, %v1945
    %v1979 = vpack.c.b16 %v1949, %v1946
    %v1980 = vpack.c.b16 %v1950, %v1947
    %v1981 = vpack.c.b16 %v1954, %v1951
    %v1982 = vpack.c.b16 %v1955, %v1952
    %v1983 = vpack.c.b16 %v1956, %v1953
    %v1984 = vpack.c.b16 %v1960, %v1957
    %v1985 = vpack.c.b16 %v1961, %v1958
    %v1986 = vpack.c.b16 %v1962, %v1959
    %2011 = vmatpush.bf16.msra.mxu0 %v1984
    %2012 = vmatpush.bf16.msra.mxu0 %v1981
    %2013 = vmatpush.bf16.msra.mxu0 %v1978
    %2014 = vmatpush.bf16.msra.mxu0 %v1975
    %2015 = vmatpush.bf16.msra.mxu0 %v1972
    %2016 = vmatpush.bf16.msra.mxu0 %v1969
    %2017 = vmatpush.bf16.msra.mxu0 %v1966
    %2018 = vmatpush.bf16.msra.mxu0 %v1963
    %2019 = vmatmul.bf16.gmra.mxu0 %v1850
    %v2020 = vpop.f32.mrf.mxu0
    %v2021 = vadd.f32 0.0, %v2020
    %v2022 = vpop.f32.mrf.mxu0
    %2023 = vdwg.mxu0
    %2024 = vmatpush.bf16.msra.mxu0 %v1985
    %2025 = vmatpush.bf16.msra.mxu0 %v1982
    %2026 = vmatpush.bf16.msra.mxu0 %v1979
    %2027 = vmatpush.bf16.msra.mxu0 %v1976
    %2028 = vmatpush.bf16.msra.mxu0 %v1973
    %2029 = vmatpush.bf16.msra.mxu0 %v1970
    %2030 = vmatpush.bf16.msra.mxu0 %v1967
    %2031 = vmatpush.bf16.msra.mxu0 %v1964
    %2032 = vmatmul.bf16.gmra.mxu0 %v1850
    %v2033 = vpop.f32.mrf.mxu0
    %v2034 = vadd.f32 0.0, %v2033
    %v2035 = vpop.f32.mrf.mxu0
    %2036 = vdwg.mxu0
    %2037 = vmatpush.bf16.msra.mxu0 %v1986
    %2038 = vmatpush.bf16.msra.mxu0 %v1983
    %2039 = vmatpush.bf16.msra.mxu0 %v1980
    %2040 = vmatpush.bf16.msra.mxu0 %v1977
    %2041 = vmatpush.bf16.msra.mxu0 %v1974
    %2042 = vmatpush.bf16.msra.mxu0 %v1971
    %2043 = vmatpush.bf16.msra.mxu0 %v1968
    %2044 = vmatpush.bf16.msra.mxu0 %v1965
    %2045 = vmatmul.bf16.gmra.mxu0 %v1850
    %v2046 = vpop.f32.mrf.mxu0
    %v2047 = vadd.f32 0.0, %v2046
    %v2048 = vpop.f32.mrf.mxu0
    %2049 = vdwg.mxu0
    %v2050 = vadd.f32 %v1847, %v2021
    %v2051 = vxor.u32 %v2050, 2147483648
    %v2052 = vmul.f32 %v2051, 1.442695
    %v2053 = vpow.pop %v2052
    %v2054 = vadd.f32 %v2053, 1.0
    %v2055 = vrcp.pop %v2054
    %v2056 = vmul.f32 %v2054, %v2055
    %v2057 = vsub.f32 1.0, %v2056
    %v2058 = vmul.f32 %v2055, %v2057
    %v2059 = vadd.f32 %v2055, %v2058
    %vm2060 = vweird.f32 %v2054
    %vm2061 = vweird.f32 %v2055
    %vm2062 = vmor %vm2060, %vm2061
    %v2063 = vsel %vm2062, %v2055, %v2059
    %v2064 = vand.u32 2147483647, %v2054
    %vm2065 = vcmp.eq.f32.partialorder %v2064, 8.507059e+37
    %v2066 = vand.u32 %v2054, 2147483648
    %v2067 = vor.u32 1.1754944e-38, %v2066
    %v2068 = vsel %vm2065, %v2067, %v2063
    %v2069 = vmul.f32 1.0, %v2068
    %v2070 = vadd.f32 %v1848, %v2034
    %v2071 = vxor.u32 %v2070, 2147483648
    %v2072 = vmul.f32 %v2071, 1.442695
    %v2073 = vpow.pop %v2072
    %v2074 = vadd.f32 %v2073, 1.0
    %v2075 = vrcp.pop %v2074
    %v2076 = vmul.f32 %v2074, %v2075
    %v2077 = vsub.f32 1.0, %v2076
    %v2078 = vmul.f32 %v2075, %v2077
    %v2079 = vadd.f32 %v2075, %v2078
    %vm2080 = vweird.f32 %v2074
    %vm2081 = vweird.f32 %v2075
    %vm2082 = vmor %vm2080, %vm2081
    %v2083 = vsel %vm2082, %v2075, %v2079
    %v2084 = vand.u32 2147483647, %v2074
    %vm2085 = vcmp.eq.f32.partialorder %v2084, 8.507059e+37
    %v2086 = vand.u32 %v2074, 2147483648
    %v2087 = vor.u32 1.1754944e-38, %v2086
    %v2088 = vsel %vm2085, %v2087, %v2083
    %v2089 = vmul.f32 1.0, %v2088
    %v2090 = vadd.f32 %v2047, %v512
    %v2091 = vmul.f32 %v2069, %v2090
    %v2092 = vadd.f32 %v1849, %v2091
    %v2093 = vtanh.pop %v2092
    %v2094 = vsub.f32 1.0, %v2089
    %v2095 = vmul.f32 %v2094, %v2093
    %v2096 = vmul.f32 %v2089, %v1843
    %v2097 = vadd.f32 %v2095, %v2096
    %s2098 = sadd.s32 %s266, 6
    %v2099 = vstv %s2098
    %vm2100 = vcmp.lt.s32.totalorder %v2099, %v265
    %v2101 = vsel %vm2100, 1, 0
    %2102 = vset.pattern.permute.xlu0 0
    %2103 = vperm.xlu0 %2102, %v2101
    %v2104 = vpop.permute.xlu0 %2103
    %vm2105 = vcmp.eq.s32.totalorder %v2104, 1
    %v2106 = vsel %vm2105, %v2097, %v1843
    %v2107 = vsel %vm2105, %v2097, 0.0
    %s2108 = scalar_lea.vmem [#allocation10], 48
    %2109 = vst [vmem:[%s2108] sm:$0xff] %v2107
    %v2110 = vld [vmem:[#allocation2 + $0xa8] sm:$0xff]
    %v2111 = vld [vmem:[#allocation2 + $0xb0] sm:$0xff]
    %v2112 = vld [vmem:[#allocation2 + $0xb8] sm:$0xff]
    %v2113 = vpack.c.bf16 %v2106, %v2106
    %v2114 = vld [vmem:[#allocation9] sm:$0xff]
    %v2115 = vld [vmem:[#allocation9 + $0x8] sm:$0xf]
    %v2116 = vld [vmem:[#allocation9 + $0xc] sm:$0xff]
    %v2117 = vld [vmem:[#allocation9 + $0x14] sm:$0xf]
    %v2118 = vld [vmem:[#allocation9 + $0x18] sm:$0xff]
    %v2119 = vld [vmem:[#allocation9 + $0x20] sm:$0xf]
    %v2120 = vld [vmem:[#allocation9 + $0x24] sm:$0xff]
    %v2121 = vld [vmem:[#allocation9 + $0x2c] sm:$0xf]
    %v2122 = vld [vmem:[#allocation9 + $0x30] sm:$0xff]
    %v2123 = vld [vmem:[#allocation9 + $0x38] sm:$0xf]
    %v2124 = vld [vmem:[#allocation9 + $0x3c] sm:$0xff]
    %v2125 = vld [vmem:[#allocation9 + $0x44] sm:$0xf]
    %v2126 = vld [vmem:[#allocation9 + $0x48] sm:$0xff]
    %v2127 = vld [vmem:[#allocation9 + $0x50] sm:$0xf]
    %v2128 = vld [vmem:[#allocation9 + $0x54] sm:$0xff]
    %v2129 = vld [vmem:[#allocation9 + $0x5c] sm:$0xf]
    %v2130 = vld [vmem:[#allocation9 + $0x60] sm:$0xff]
    %v2131 = vld [vmem:[#allocation9 + $0x68] sm:$0xf]
    %v2132 = vld [vmem:[#allocation9 + $0x6c] sm:$0xff]
    %v2133 = vld [vmem:[#allocation9 + $0x74] sm:$0xf]
    %v2134 = vld [vmem:[#allocation9 + $0x78] sm:$0xff]
    %v2135 = vld [vmem:[#allocation9 + $0x80] sm:$0xf]
    %v2136 = vld [vmem:[#allocation9 + $0x84] sm:$0xff]
    %v2137 = vld [vmem:[#allocation9 + $0x8c] sm:$0xf]
    %v2138 = vld [vmem:[#allocation9 + $0x90] sm:$0xff]
    %v2139 = vld [vmem:[#allocation9 + $0x98] sm:$0xf]
    %v2140 = vld [vmem:[#allocation9 + $0x9c] sm:$0xff]
    %v2141 = vld [vmem:[#allocation9 + $0xa4] sm:$0xf]
    %v2142 = vld [vmem:[#allocation9 + $0xa8] sm:$0xff]
    %v2143 = vld [vmem:[#allocation9 + $0xb0] sm:$0xf]
    %v2144 = vld [vmem:[#allocation9 + $0xb4] sm:$0xff]
    %v2145 = vld [vmem:[#allocation9 + $0xbc] sm:$0xf]
    %v2178 = vunpack.c.l.b16 %v2114
    %v2179 = vunpack.c.h.b16 %v2114
    %v2180 = vunpack.c.l.b16 %v2115
    %v2181 = vunpack.c.l.b16 %v2116
    %v2182 = vunpack.c.h.b16 %v2116
    %v2183 = vunpack.c.l.b16 %v2117
    %v2184 = vunpack.c.l.b16 %v2118
    %v2185 = vunpack.c.h.b16 %v2118
    %v2186 = vunpack.c.l.b16 %v2119
    %v2187 = vunpack.c.l.b16 %v2120
    %v2188 = vunpack.c.h.b16 %v2120
    %v2189 = vunpack.c.l.b16 %v2121
    %v2190 = vunpack.c.l.b16 %v2122
    %v2191 = vunpack.c.h.b16 %v2122
    %v2192 = vunpack.c.l.b16 %v2123
    %v2193 = vunpack.c.l.b16 %v2124
    %v2194 = vunpack.c.h.b16 %v2124
    %v2195 = vunpack.c.l.b16 %v2125
    %v2196 = vunpack.c.l.b16 %v2126
    %v2197 = vunpack.c.h.b16 %v2126
    %v2198 = vunpack.c.l.b16 %v2127
    %v2199 = vunpack.c.l.b16 %v2128
    %v2200 = vunpack.c.h.b16 %v2128
    %v2201 = vunpack.c.l.b16 %v2129
    %v2202 = vunpack.c.l.b16 %v2130
    %v2203 = vunpack.c.h.b16 %v2130
    %v2204 = vunpack.c.l.b16 %v2131
    %v2205 = vunpack.c.l.b16 %v2132
    %v2206 = vunpack.c.h.b16 %v2132
    %v2207 = vunpack.c.l.b16 %v2133
    %v2208 = vunpack.c.l.b16 %v2134
    %v2209 = vunpack.c.h.b16 %v2134
    %v2210 = vunpack.c.l.b16 %v2135
    %v2211 = vunpack.c.l.b16 %v2136
    %v2212 = vunpack.c.h.b16 %v2136
    %v2213 = vunpack.c.l.b16 %v2137
    %v2214 = vunpack.c.l.b16 %v2138
    %v2215 = vunpack.c.h.b16 %v2138
    %v2216 = vunpack.c.l.b16 %v2139
    %v2217 = vunpack.c.l.b16 %v2140
    %v2218 = vunpack.c.h.b16 %v2140
    %v2219 = vunpack.c.l.b16 %v2141
    %v2220 = vunpack.c.l.b16 %v2142
    %v2221 = vunpack.c.h.b16 %v2142
    %v2222 = vunpack.c.l.b16 %v2143
    %v2223 = vunpack.c.l.b16 %v2144
    %v2224 = vunpack.c.h.b16 %v2144
    %v2225 = vunpack.c.l.b16 %v2145
    %v2226 = vpack.c.b16 %v2181, %v2178
    %v2227 = vpack.c.b16 %v2182, %v2179
    %v2228 = vpack.c.b16 %v2183, %v2180
    %v2229 = vpack.c.b16 %v2187, %v2184
    %v2230 = vpack.c.b16 %v2188, %v2185
    %v2231 = vpack.c.b16 %v2189, %v2186
    %v2232 = vpack.c.b16 %v2193, %v2190
    %v2233 = vpack.c.b16 %v2194, %v2191
    %v2234 = vpack.c.b16 %v2195, %v2192
    %v2235 = vpack.c.b16 %v2199, %v2196
    %v2236 = vpack.c.b16 %v2200, %v2197
    %v2237 = vpack.c.b16 %v2201, %v2198
    %v2238 = vpack.c.b16 %v2205, %v2202
    %v2239 = vpack.c.b16 %v2206, %v2203
    %v2240 = vpack.c.b16 %v2207, %v2204
    %v2241 = vpack.c.b16 %v2211, %v2208
    %v2242 = vpack.c.b16 %v2212, %v2209
    %v2243 = vpack.c.b16 %v2213, %v2210
    %v2244 = vpack.c.b16 %v2217, %v2214
    %v2245 = vpack.c.b16 %v2218, %v2215
    %v2246 = vpack.c.b16 %v2219, %v2216
    %v2247 = vpack.c.b16 %v2223, %v2220
    %v2248 = vpack.c.b16 %v2224, %v2221
    %v2249 = vpack.c.b16 %v2225, %v2222
    %2274 = vmatpush.bf16.msra.mxu0 %v2247
    %2275 = vmatpush.bf16.msra.mxu0 %v2244
    %2276 = vmatpush.bf16.msra.mxu0 %v2241
    %2277 = vmatpush.bf16.msra.mxu0 %v2238
    %2278 = vmatpush.bf16.msra.mxu0 %v2235
    %2279 = vmatpush.bf16.msra.mxu0 %v2232
    %2280 = vmatpush.bf16.msra.mxu0 %v2229
    %2281 = vmatpush.bf16.msra.mxu0 %v2226
    %2282 = vmatmul.bf16.gmra.mxu0 %v2113
    %v2283 = vpop.f32.mrf.mxu0
    %v2284 = vadd.f32 0.0, %v2283
    %v2285 = vpop.f32.mrf.mxu0
    %2286 = vdwg.mxu0
    %2287 = vmatpush.bf16.msra.mxu0 %v2248
    %2288 = vmatpush.bf16.msra.mxu0 %v2245
    %2289 = vmatpush.bf16.msra.mxu0 %v2242
    %2290 = vmatpush.bf16.msra.mxu0 %v2239
    %2291 = vmatpush.bf16.msra.mxu0 %v2236
    %2292 = vmatpush.bf16.msra.mxu0 %v2233
    %2293 = vmatpush.bf16.msra.mxu0 %v2230
    %2294 = vmatpush.bf16.msra.mxu0 %v2227
    %2295 = vmatmul.bf16.gmra.mxu0 %v2113
    %v2296 = vpop.f32.mrf.mxu0
    %v2297 = vadd.f32 0.0, %v2296
    %v2298 = vpop.f32.mrf.mxu0
    %2299 = vdwg.mxu0
    %2300 = vmatpush.bf16.msra.mxu0 %v2249
    %2301 = vmatpush.bf16.msra.mxu0 %v2246
    %2302 = vmatpush.bf16.msra.mxu0 %v2243
    %2303 = vmatpush.bf16.msra.mxu0 %v2240
    %2304 = vmatpush.bf16.msra.mxu0 %v2237
    %2305 = vmatpush.bf16.msra.mxu0 %v2234
    %2306 = vmatpush.bf16.msra.mxu0 %v2231
    %2307 = vmatpush.bf16.msra.mxu0 %v2228
    %2308 = vmatmul.bf16.gmra.mxu0 %v2113
    %v2309 = vpop.f32.mrf.mxu0
    %v2310 = vadd.f32 0.0, %v2309
    %v2311 = vpop.f32.mrf.mxu0
    %2312 = vdwg.mxu0
    %v2313 = vadd.f32 %v2110, %v2284
    %v2314 = vxor.u32 %v2313, 2147483648
    %v2315 = vmul.f32 %v2314, 1.442695
    %v2316 = vpow.pop %v2315
    %v2317 = vadd.f32 %v2316, 1.0
    %v2318 = vrcp.pop %v2317
    %v2319 = vmul.f32 %v2317, %v2318
    %v2320 = vsub.f32 1.0, %v2319
    %v2321 = vmul.f32 %v2318, %v2320
    %v2322 = vadd.f32 %v2318, %v2321
    %vm2323 = vweird.f32 %v2317
    %vm2324 = vweird.f32 %v2318
    %vm2325 = vmor %vm2323, %vm2324
    %v2326 = vsel %vm2325, %v2318, %v2322
    %v2327 = vand.u32 2147483647, %v2317
    %vm2328 = vcmp.eq.f32.partialorder %v2327, 8.507059e+37
    %v2329 = vand.u32 %v2317, 2147483648
    %v2330 = vor.u32 1.1754944e-38, %v2329
    %v2331 = vsel %vm2328, %v2330, %v2326
    %v2332 = vmul.f32 1.0, %v2331
    %v2333 = vadd.f32 %v2111, %v2297
    %v2334 = vxor.u32 %v2333, 2147483648
    %v2335 = vmul.f32 %v2334, 1.442695
    %v2336 = vpow.pop %v2335
    %v2337 = vadd.f32 %v2336, 1.0
    %v2338 = vrcp.pop %v2337
    %v2339 = vmul.f32 %v2337, %v2338
    %v2340 = vsub.f32 1.0, %v2339
    %v2341 = vmul.f32 %v2338, %v2340
    %v2342 = vadd.f32 %v2338, %v2341
    %vm2343 = vweird.f32 %v2337
    %vm2344 = vweird.f32 %v2338
    %vm2345 = vmor %vm2343, %vm2344
    %v2346 = vsel %vm2345, %v2338, %v2342
    %v2347 = vand.u32 2147483647, %v2337
    %vm2348 = vcmp.eq.f32.partialorder %v2347, 8.507059e+37
    %v2349 = vand.u32 %v2337, 2147483648
    %v2350 = vor.u32 1.1754944e-38, %v2349
    %v2351 = vsel %vm2348, %v2350, %v2346
    %v2352 = vmul.f32 1.0, %v2351
    %v2353 = vadd.f32 %v2310, %v512
    %v2354 = vmul.f32 %v2332, %v2353
    %v2355 = vadd.f32 %v2112, %v2354
    %v2356 = vtanh.pop %v2355
    %v2357 = vsub.f32 1.0, %v2352
    %v2358 = vmul.f32 %v2357, %v2356
    %v2359 = vmul.f32 %v2352, %v2106
    %v2360 = vadd.f32 %v2358, %v2359
    %s2361 = sadd.s32 %s266, 7
    %v2362 = vstv %s2361
    %vm2363 = vcmp.lt.s32.totalorder %v2362, %v265
    %v2364 = vsel %vm2363, 1, 0
    %2365 = vset.pattern.permute.xlu0 0
    %2366 = vperm.xlu0 %2365, %v2364
    %v2367 = vpop.permute.xlu0 %2366
    %vm2368 = vcmp.eq.s32.totalorder %v2367, 1
    %v2369 = vsel %vm2368, %v2360, %v2106
    %v2370 = vsel %vm2368, %v2360, 0.0
    %s2371 = scalar_lea.vmem [#allocation10], 56
    %2372 = vst [vmem:[%s2371] sm:$0xff] %v2370
    %2373 = vst [vmem:[#allocation3] sm:$0xff] %v2369
    %2374 = vst [vmem:[#allocation11] sm:$0xff] %v2369
    // Predicated region
    $region42: #{tpu_custom_call.1} parent=1 // pred_check
      _
    $region43: #{tpu_custom_call.1} parent=1 // pred_check_branch
      %2376 = sbr.rel (0) target = $region45
    $region44: #{tpu_custom_call.1} parent=1 // pred_region
      %2378 = vsyncadd [#allocation6], 0
      %s2379 = sshll.u32 [#allocation10], 4
      %s2380 = int_to_ptr.vmem [resolvable:$true] %s2379
      %s2381 = sshll.u32 %s6, 4
      %s2382 = int_to_ptr.hbm [resolvable:$true] %s2381
      %2387 = dma.vmem_to_hbm [thread:$0]  %s2380, 1024, %s2382, [#allocation6], 128, 128, 8
    $region45: #{tpu_custom_call.1} parent=1 // pred_fallthru
      _
    // Predicated region
    $region46: #{tpu_custom_call.1} parent=1 // pred_check
      _
    $region47: #{tpu_custom_call.1} parent=1 // pred_check_branch
      %2389 = sbr.rel (0) target = $region49
    $region48: #{tpu_custom_call.1} parent=1 // pred_region
      %2391 = vsyncadd [#allocation12], 0
      %s2393 = sshll.u32 [#allocation11], 4
      %s2394 = int_to_ptr.vmem [resolvable:$true] %s2393
      %s2395 = sshll.u32 %s7, 4
      %s2396 = int_to_ptr.hbm [resolvable:$true] %s2395
      %2398 = dma.vmem_to_hbm [thread:$0]  %s2394, 128, %s2396, [#allocation12]
    $region49: #{tpu_custom_call.1} parent=1 // pred_fallthru
      _
    // Predicated region
    $region50: #{tpu_custom_call.1} parent=1 // pred_check
      _
    $region51: #{tpu_custom_call.1} parent=1 // pred_check_branch
      %2400 = sbr.rel (0) target = $region53
    $region52: #{tpu_custom_call.1} parent=1 // pred_region
      %2402 = dma.done [#allocation6], 1024
    $region53: #{tpu_custom_call.1} parent=1 // pred_fallthru
      _
    // Predicated region
    $region54: #{tpu_custom_call.1} parent=1 // pred_check
      _
    $region55: #{tpu_custom_call.1} parent=1 // pred_check_branch
      %2404 = sbr.rel (0) target = $region57
    $region56: #{tpu_custom_call.1} parent=1 // pred_region
      %2406 = dma.done [#allocation12], 128
    $region57: #{tpu_custom_call.1} parent=1 // pred_fallthru
      _
    %2407 = vsyncpa [#allocation5], 1
    %2408 = vsyncpa [#allocation8], 1
    %2409 = vsyncpa [#allocation6], 1
    %2410 = vsyncpa [#allocation12], 1

</llo_original>
